<compile_context>
chip_gen: v7x
topology: tpu7x:2x2x1
jax: 0.10.0
libtpu: 0.0.40
codegen_flags: <defaults>
</compile_context>

<pallas_src>
import jax
import jax.numpy as jnp
import numpy as np
from jax import lax
from jax.experimental import pallas as pl
from jax.experimental.pallas import tpu as pltpu

BETA = 0.9          # leak factor
THRESHOLD = 1.0     # firing threshold


def _snn_leaky_kernel(x_ref, wT_ref, b_ref, spk_ref, mem_ref,
                      mem_scratch, cur_scratch):
    # x_ref:       (Tt*B, N_in)   f32 input slab (cast to matmul dtype here)
    # wT_ref:      (N_in, Nt)     pre-transposed weight tile (matmul dtype)
    # b_ref:       (1, Nt)        f32 bias
    # spk_ref:     (Tt*B, Nt)     spike trace tile (lane-dense 2D slab)
    # mem_ref:     (Tt*B, Nt)     membrane trace tile
    # mem_scratch: (B, Nt)        f32 carried membrane state (across time axis)
    # cur_scratch: (Tt*B, Nt)     f32 VMEM-resident matmul result
    t = pl.program_id(1)

    # Reset the carried membrane state at the first time tile (per j tile).
    @pl.when(t == 0)
    def _():
        mem_scratch[...] = jnp.zeros_like(mem_scratch)

    b = mem_scratch.shape[0]          # batch size (static)
    tt = spk_ref.shape[0] // b        # time steps in this tile (static)

    # One MXU call per time tile: (Tt*B, N_in) @ (N_in, Nt), f32 accumulation.
    # The in-kernel cast of x runs on the VPU under the MXU shadow; the bias add
    # rides on the same full-tile pass that writes cur into VMEM.
    cur_scratch[...] = (
        jnp.dot(x_ref[...].astype(wT_ref.dtype), wT_ref[...],
                preferred_element_type=jnp.float32)
        + b_ref[...]
    )

    # Sequential leak/fire/reset recurrence over the time tile. fori_loop with a
    # small unroll bounds live ranges (no full-tile vreg spill) while keeping
    # scheduler visibility; per-step slices are sublane-aligned (B % 8 == 0).
    def step(i, mem):
        off = pl.multiple_of(i * b, b)
        cur_i = cur_scratch[pl.ds(off, b), :]
        mem = BETA * mem + cur_i                     # f32 recurrence (exact)
        spk = mem >= THRESHOLD                       # fire (bool reused below)
        spk_ref[pl.ds(off, b), :] = spk.astype(jnp.float32).astype(spk_ref.dtype)
        mem = jnp.where(spk, mem - THRESHOLD, mem)   # reset by subtraction
        mem_ref[pl.ds(off, b), :] = mem.astype(mem_ref.dtype)
        return mem

    mem_scratch[...] = lax.fori_loop(0, tt, step, mem_scratch[...],
                                     unroll=min(tt, 8))


def _nbytes(shape, dtype):
    n = 1
    for s in shape:
        n *= int(s)
    return n * jnp.dtype(dtype).itemsize


def _vmem_capacity_bytes():
    try:
        return int(pltpu.get_tpu_info().vmem_capacity_bytes)
    except Exception:
        return 64 * 1024 * 1024          # conservative (v7x-sized) fallback


def _vmem_need_bytes(tt, B, N_in, n_out_tile, mm_dtype, spk_dtype, mem_dtype):
    # Conservative: assumes double-buffered weights/bias even if Buffered(1) is used.
    return (2 * _nbytes((tt * B, N_in), jnp.float32)           # x tiles (f32 in)
            + 2 * _nbytes((N_in, n_out_tile), mm_dtype)        # weight
            + 2 * _nbytes((1, n_out_tile), jnp.float32)        # bias
            + 2 * _nbytes((tt * B, n_out_tile), spk_dtype)     # spk out
            + 2 * _nbytes((tt * B, n_out_tile), mem_dtype)     # mem out
            + _nbytes((tt * B, n_out_tile), jnp.float32)       # cur scratch
            + _nbytes((B, n_out_tile), jnp.float32))           # mem scratch


def _build_call(T, B, N_in, N_out, time_tile, n_out_tile, spk_dtype, mem_dtype,
                vmem_limit, single_buffer_weights):
    n_t = T // time_tile
    n_j = N_out // n_out_tile
    w_kwargs = {}
    if single_buffer_weights:
        # Weight/bias index_maps are constant along the time axis -> one buffer,
        # no redundant per-step DMA.
        w_kwargs = dict(pipeline_mode=pl.Buffered(1))

    grid_spec = pltpu.PrefetchScalarGridSpec(
        num_scalar_prefetch=0,
        grid=(n_j, n_t),
        in_specs=[
            pl.BlockSpec((time_tile * B, N_in), lambda j, t: (t, 0)),
            pl.BlockSpec((N_in, n_out_tile), lambda j, t: (0, j), **w_kwargs),
            pl.BlockSpec((1, n_out_tile), lambda j, t: (0, j), **w_kwargs),
        ],
        out_specs=[
            pl.BlockSpec((time_tile * B, n_out_tile), lambda j, t: (t, j)),
            pl.BlockSpec((time_tile * B, n_out_tile), lambda j, t: (t, j)),
        ],
        scratch_shapes=[
            pltpu.VMEM((B, n_out_tile), jnp.float32),             # carried mem
            pltpu.VMEM((time_tile * B, n_out_tile), jnp.float32),  # cur tile
        ],
    )
    return pl.pallas_call(
        _snn_leaky_kernel,
        out_shape=(
            jax.ShapeDtypeStruct((T * B, N_out), spk_dtype),
            jax.ShapeDtypeStruct((T * B, N_out), mem_dtype),
        ),
        grid_spec=grid_spec,
        compiler_params=pltpu.CompilerParams(
            # j (output-neuron tiles) is independent -> shardable across the two
            # TensorCores on v7x; time is a true recurrence -> sequential.
            dimension_semantics=("parallel", "arbitrary"),
            vmem_limit_bytes=vmem_limit,
        ),
    )


def snn_leaky_forward(x, weight, bias, *, time_tile=None, n_out_tile=None,
                      matmul_dtype=jnp.bfloat16, spk_dtype=jnp.bfloat16,
                      mem_dtype=jnp.bfloat16):
    """x: (T, B, N_in) f32, weight: (N_out, N_in) f32, bias: (N_out,) f32.

    Returns (spk, mem), both (T, B, N_out): spk in `spk_dtype` (values 0/1),
    mem in `mem_dtype` (post-reset membrane trace; recurrence itself is f32).
    """
    T, B, N_in = x.shape
    N_out = weight.shape[0]
    assert B % 8 == 0, "batch must be a multiple of 8 (sublane tile)"

    if n_out_tile is None:
        n_out_tile = N_out               # n_j = 1: x read from HBM exactly once
    assert N_out % n_out_tile == 0
    if N_out // n_out_tile > 1:
        assert n_out_tile % 128 == 0, "tiled N_out needs 128-aligned tiles"

    cap = _vmem_capacity_bytes()
    usable = int(cap * (0.80 if cap >= 96 * 1024 * 1024 else 0.72))

    if time_tile is None:
        # Largest divisor of T, capped at 32 steps, whose footprint (with 1.5x
        # headroom for Mosaic internals) fits the generation-specific budget.
        time_tile = 1
        for cand in range(1, min(T, 32) + 1):
            if T % cand:
                continue
            need_c = _vmem_need_bytes(cand, B, N_in, n_out_tile, matmul_dtype,
                                      spk_dtype, mem_dtype)
            if int(1.5 * need_c) <= usable:
                time_tile = cand
    assert T % time_tile == 0, "time_tile must divide T"

    need = _vmem_need_bytes(time_tile, B, N_in, n_out_tile, matmul_dtype,
                            spk_dtype, mem_dtype)
    vmem_limit = int(min(max(int(1.5 * need), 32 * 1024 * 1024), usable))
    vmem_limit = int(min(max(vmem_limit, need + (2 << 20)), cap))

    # One-time, tiny wrapper-side prep: weight transpose + cast, bias to 2D.
    # x stays f32 in HBM and is only reshaped (free metadata op); its bf16 cast
    # happens inside the kernel instead of a separate XLA read/write pass.
    wT = weight.T.astype(matmul_dtype)                    # (N_in, N_out)
    bias2d = bias.astype(jnp.float32).reshape(1, N_out)
    x_flat = x.reshape(T * B, N_in)

    args = (T, B, N_in, N_out, time_tile, n_out_tile, spk_dtype, mem_dtype,
            vmem_limit)
    try:
        spk, mem = _build_call(*args, single_buffer_weights=True)(
            x_flat, wT, bias2d)
    except Exception:
        # pl.Buffered(1) unsupported by this jax/Mosaic build -> default 2-deep.
        spk, mem = _build_call(*args, single_buffer_weights=False)(
            x_flat, wT, bias2d)

    return spk.reshape(T, B, N_out), mem.reshape(T, B, N_out)


def snn_leaky_reference(x, weight, bias, matmul_dtype=jnp.float32):
    """Pure-JAX reference: projection in `matmul_dtype` with f32 accumulation,
    recurrence always f32 (mirrors the kernel)."""
    T, B, _ = x.shape
    N_out = weight.shape[0]
    wT = weight.T.astype(matmul_dtype)
    xm = x.astype(matmul_dtype)
    b = bias.astype(jnp.float32)
    mem = jnp.zeros((B, N_out), jnp.float32)
    spks, mems = [], []
    for t in range(T):
        cur = jnp.dot(xm[t], wT, preferred_element_type=jnp.float32) + b
        mem = BETA * mem + cur
        spk = (mem >= THRESHOLD).astype(jnp.float32)
        mem = mem - spk * THRESHOLD
        spks.append(spk)
        mems.append(mem)
    return jnp.stack(spks), jnp.stack(mems)


if __name__ == "__main__":
    key = jax.random.PRNGKey(0)
    T, B, N_in, N_out = 8, 8, 64, 128

    kx, kw, kb = jax.random.split(key, 3)
    x = jax.random.normal(kx, (T, B, N_in), dtype=jnp.float32)
    weight = jax.random.normal(kw, (N_out, N_in), dtype=jnp.float32) * (1.0 / np.sqrt(N_in))
    bias = jax.random.normal(kb, (N_out,), dtype=jnp.float32) * 0.1

    # (1) Exact-semantics check: full-f32 path (multiple time tiles exercises the
    #     carried membrane scratch) vs. the f32 reference.
    spk32, mem32 = jax.block_until_ready(
        snn_leaky_forward(x, weight, bias, time_tile=4,
                          matmul_dtype=jnp.float32, spk_dtype=jnp.float32,
                          mem_dtype=jnp.float32))
    spk_r, mem_r = snn_leaky_reference(x, weight, bias, jnp.float32)
    np.testing.assert_allclose(np.asarray(spk32), np.asarray(spk_r), atol=1e-5)
    np.testing.assert_allclose(np.asarray(mem32), np.asarray(mem_r), atol=1e-5)

    # (2) Optimized default path (bf16 MXU inputs, bf16 spk/mem traces).
    #     Statistical check: a borderline spike flip (MXU-vs-XLA rounding) moves
    #     mem by THRESHOLD, so compare mismatch fractions, not tight allclose.
    spk_bf, mem_bf = jax.block_until_ready(snn_leaky_forward(x, weight, bias))
    spk_rb, mem_rb = snn_leaky_reference(x, weight, bias, jnp.bfloat16)
    spk_mis = float(np.mean(np.asarray(spk_bf.astype(jnp.float32))
                            != np.asarray(spk_rb)))
    mem_mis = float(np.mean(np.abs(np.asarray(mem_bf.astype(jnp.float32))
                                   - np.asarray(mem_rb)) > 5e-2))
    assert spk_mis < 1e-2, f"spike mismatch fraction too high: {spk_mis}"
    assert mem_mis < 1e-2, f"membrane mismatch fraction too high: {mem_mis}"

    print("KERNEL_OK")
</pallas_src>

<mosaic_0001>
module attributes {stable_mosaic.version = 11 : i64} {
  func.func @_snn_leaky_kernel(%arg0: i32, %arg1: i32, %arg2: memref<32x64xf32, #tpu.memory_space<vmem>>, %arg3: memref<64x128xf32, #tpu.memory_space<vmem>>, %arg4: memref<1x128xf32, #tpu.memory_space<vmem>>, %arg5: memref<32x128xf32, #tpu.memory_space<vmem>>, %arg6: memref<32x128xf32, #tpu.memory_space<vmem>>, %arg7: memref<8x128xf32, #tpu.memory_space<vmem>>, %arg8: memref<32x128xf32, #tpu.memory_space<vmem>>) attributes {dimension_semantics = [#tpu.dimension_semantics<parallel>, #tpu.dimension_semantics<arbitrary>], iteration_bounds = array<i64: 1, 2>, scalar_prefetch = 0 : i64, scratch_operands = 2 : i64, tpu.core_type = #tpu.core_type<tc>, window_params = [{transform_indices = @transform_0, window_bounds = array<i64: 32, 64>}, {pipeline_mode = #tpu.pipeline_mode<synchronous>, transform_indices = @transform_1, window_bounds = array<i64: 64, 128>}, {pipeline_mode = #tpu.pipeline_mode<synchronous>, transform_indices = @transform_2, window_bounds = array<i64: 1, 128>}, {transform_indices = @transform_3, window_bounds = array<i64: 32, 128>}, {transform_indices = @transform_4, window_bounds = array<i64: 32, 128>}]} {
    %c0_i32 = arith.constant 0 : i32
    %0 = arith.cmpi eq, %arg1, %c0_i32 : i32
    %1 = arith.extui %0 : i1 to i32
    %c0_i32_0 = arith.constant 0 : i32
    %2 = arith.cmpi ne, %1, %c0_i32_0 : i32
    scf.if %2 {
      %cst_40 = arith.constant 0.000000e+00 : f32
      %84 = vector.broadcast %cst_40 : f32 to vector<8x128xf32>
      %c0_41 = arith.constant 0 : index
      %c0_42 = arith.constant 0 : index
      %85 = vector.load %arg7[%c0_41, %c0_42] : memref<8x128xf32, #tpu.memory_space<vmem>>, vector<8x128xf32>
      tpu.vector_store %arg7[%c0_41, %c0_42], %84 {strides = array<i32>} : memref<8x128xf32, #tpu.memory_space<vmem>>, vector<8x128xf32>,
    } else {
    }
    %c0 = arith.constant 0 : index
    %c0_1 = arith.constant 0 : index
    %3 = vector.load %arg2[%c0, %c0_1] : memref<32x64xf32, #tpu.memory_space<vmem>>, vector<32x64xf32>
    %c0_2 = arith.constant 0 : index
    %c0_3 = arith.constant 0 : index
    %4 = vector.load %arg3[%c0_2, %c0_3] : memref<64x128xf32, #tpu.memory_space<vmem>>, vector<64x128xf32>
    %cst = arith.constant dense<0.000000e+00> : vector<32x128xf32>
    %5 = tpu.matmul %3, %4, %cst {dimension_numbers = #tpu.dot_dimension_numbers<[1], [0], [0], [1], [0, 0, 1, 1], [], []>} : vector<32x64xf32>, vector<64x128xf32>, vector<32x128xf32> -> vector<32x128xf32>
    %c0_4 = arith.constant 0 : index
    %c0_5 = arith.constant 0 : index
    %6 = vector.load %arg4[%c0_4, %c0_5] : memref<1x128xf32, #tpu.memory_space<vmem>>, vector<1x128xf32>
    %7 = vector.broadcast %6 : vector<1x128xf32> to vector<32x128xf32>
    %8 = arith.addf %5, %7 : vector<32x128xf32>
    %c0_6 = arith.constant 0 : index
    %c0_7 = arith.constant 0 : index
    %9 = vector.load %arg8[%c0_6, %c0_7] : memref<32x128xf32, #tpu.memory_space<vmem>>, vector<32x128xf32>
    tpu.vector_store %arg8[%c0_6, %c0_7], %8 {strides = array<i32>} : memref<32x128xf32, #tpu.memory_space<vmem>>, vector<32x128xf32>,
    %c0_8 = arith.constant 0 : index
    %c0_9 = arith.constant 0 : index
    %10 = vector.load %arg7[%c0_8, %c0_9] : memref<8x128xf32, #tpu.memory_space<vmem>>, vector<8x128xf32>
    %c0_i32_10 = arith.constant 0 : i32
    %c8_i32 = arith.constant 8 : i32
    %11 = arith.muli %c0_i32_10, %c8_i32 : i32
    %12 = tpu.assume_multiple %11, 8 : i32
    %13 = arith.index_cast %12 : i32 to index
    %c0_11 = arith.constant 0 : index
    %14 = vector.load %arg8[%13, %c0_11] : memref<32x128xf32, #tpu.memory_space<vmem>>, vector<8x128xf32>
    %cst_12 = arith.constant 0.899999976 : f32
    %15 = vector.broadcast %cst_12 : f32 to vector<8x128xf32>
    %16 = arith.mulf %15, %10 : vector<8x128xf32>
    %17 = arith.addf %16, %14 : vector<8x128xf32>
    %cst_13 = arith.constant 1.000000e+00 : f32
    %18 = vector.broadcast %cst_13 : f32 to vector<8x128xf32>
    %19 = arith.cmpf oge, %17, %18 : vector<8x128xf32>
    %20 = arith.extui %19 : vector<8x128xi1> to vector<8x128xi32>
    %21 = arith.sitofp %20 : vector<8x128xi32> to vector<8x128xf32>
    %22 = arith.index_cast %12 : i32 to index
    %c0_14 = arith.constant 0 : index
    %23 = vector.load %arg5[%22, %c0_14] : memref<32x128xf32, #tpu.memory_space<vmem>>, vector<8x128xf32>
    tpu.vector_store %arg5[%22, %c0_14], %21 {strides = array<i32>} : memref<32x128xf32, #tpu.memory_space<vmem>>, vector<8x128xf32>,
    %cst_15 = arith.constant 1.000000e+00 : f32
    %24 = vector.broadcast %cst_15 : f32 to vector<8x128xf32>
    %25 = arith.subf %17, %24 : vector<8x128xf32>
    %26 = arith.select %19, %25, %17 : vector<8x128xi1>, vector<8x128xf32>
    %27 = arith.index_cast %12 : i32 to index
    %c0_16 = arith.constant 0 : index
    %28 = vector.load %arg6[%27, %c0_16] : memref<32x128xf32, #tpu.memory_space<vmem>>, vector<8x128xf32>
    tpu.vector_store %arg6[%27, %c0_16], %26 {strides = array<i32>} : memref<32x128xf32, #tpu.memory_space<vmem>>, vector<8x128xf32>,
    %c1_i32 = arith.constant 1 : i32
    %c8_i32_17 = arith.constant 8 : i32
    %29 = arith.muli %c1_i32, %c8_i32_17 : i32
    %30 = tpu.assume_multiple %29, 8 : i32
    %31 = arith.index_cast %30 : i32 to index
    %c0_18 = arith.constant 0 : index
    %32 = vector.load %arg8[%31, %c0_18] : memref<32x128xf32, #tpu.memory_space<vmem>>, vector<8x128xf32>
    %cst_19 = arith.constant 0.899999976 : f32
    %33 = vector.broadcast %cst_19 : f32 to vector<8x128xf32>
    %34 = arith.mulf %33, %26 : vector<8x128xf32>
    %35 = arith.addf %34, %32 : vector<8x128xf32>
    %cst_20 = arith.constant 1.000000e+00 : f32
    %36 = vector.broadcast %cst_20 : f32 to vector<8x128xf32>
    %37 = arith.cmpf oge, %35, %36 : vector<8x128xf32>
    %38 = arith.extui %37 : vector<8x128xi1> to vector<8x128xi32>
    %39 = arith.sitofp %38 : vector<8x128xi32> to vector<8x128xf32>
    %40 = arith.index_cast %30 : i32 to index
    %c0_21 = arith.constant 0 : index
    %41 = vector.load %arg5[%40, %c0_21] : memref<32x128xf32, #tpu.memory_space<vmem>>, vector<8x128xf32>
    tpu.vector_store %arg5[%40, %c0_21], %39 {strides = array<i32>} : memref<32x128xf32, #tpu.memory_space<vmem>>, vector<8x128xf32>,
    %cst_22 = arith.constant 1.000000e+00 : f32
    %42 = vector.broadcast %cst_22 : f32 to vector<8x128xf32>
    %43 = arith.subf %35, %42 : vector<8x128xf32>
    %44 = arith.select %37, %43, %35 : vector<8x128xi1>, vector<8x128xf32>
    %45 = arith.index_cast %30 : i32 to index
    %c0_23 = arith.constant 0 : index
    %46 = vector.load %arg6[%45, %c0_23] : memref<32x128xf32, #tpu.memory_space<vmem>>, vector<8x128xf32>
    tpu.vector_store %arg6[%45, %c0_23], %44 {strides = array<i32>} : memref<32x128xf32, #tpu.memory_space<vmem>>, vector<8x128xf32>,
    %c2_i32 = arith.constant 2 : i32
    %c8_i32_24 = arith.constant 8 : i32
    %47 = arith.muli %c2_i32, %c8_i32_24 : i32
    %48 = tpu.assume_multiple %47, 8 : i32
    %49 = arith.index_cast %48 : i32 to index
    %c0_25 = arith.constant 0 : index
    %50 = vector.load %arg8[%49, %c0_25] : memref<32x128xf32, #tpu.memory_space<vmem>>, vector<8x128xf32>
    %cst_26 = arith.constant 0.899999976 : f32
    %51 = vector.broadcast %cst_26 : f32 to vector<8x128xf32>
    %52 = arith.mulf %51, %44 : vector<8x128xf32>
    %53 = arith.addf %52, %50 : vector<8x128xf32>
    %cst_27 = arith.constant 1.000000e+00 : f32
    %54 = vector.broadcast %cst_27 : f32 to vector<8x128xf32>
    %55 = arith.cmpf oge, %53, %54 : vector<8x128xf32>
    %56 = arith.extui %55 : vector<8x128xi1> to vector<8x128xi32>
    %57 = arith.sitofp %56 : vector<8x128xi32> to vector<8x128xf32>
    %58 = arith.index_cast %48 : i32 to index
    %c0_28 = arith.constant 0 : index
    %59 = vector.load %arg5[%58, %c0_28] : memref<32x128xf32, #tpu.memory_space<vmem>>, vector<8x128xf32>
    tpu.vector_store %arg5[%58, %c0_28], %57 {strides = array<i32>} : memref<32x128xf32, #tpu.memory_space<vmem>>, vector<8x128xf32>,
    %cst_29 = arith.constant 1.000000e+00 : f32
    %60 = vector.broadcast %cst_29 : f32 to vector<8x128xf32>
    %61 = arith.subf %53, %60 : vector<8x128xf32>
    %62 = arith.select %55, %61, %53 : vector<8x128xi1>, vector<8x128xf32>
    %63 = arith.index_cast %48 : i32 to index
    %c0_30 = arith.constant 0 : index
    %64 = vector.load %arg6[%63, %c0_30] : memref<32x128xf32, #tpu.memory_space<vmem>>, vector<8x128xf32>
    tpu.vector_store %arg6[%63, %c0_30], %62 {strides = array<i32>} : memref<32x128xf32, #tpu.memory_space<vmem>>, vector<8x128xf32>,
    %c3_i32 = arith.constant 3 : i32
    %c8_i32_31 = arith.constant 8 : i32
    %65 = arith.muli %c3_i32, %c8_i32_31 : i32
    %66 = tpu.assume_multiple %65, 8 : i32
    %67 = arith.index_cast %66 : i32 to index
    %c0_32 = arith.constant 0 : index
    %68 = vector.load %arg8[%67, %c0_32] : memref<32x128xf32, #tpu.memory_space<vmem>>, vector<8x128xf32>
    %cst_33 = arith.constant 0.899999976 : f32
    %69 = vector.broadcast %cst_33 : f32 to vector<8x128xf32>
    %70 = arith.mulf %69, %62 : vector<8x128xf32>
    %71 = arith.addf %70, %68 : vector<8x128xf32>
    %cst_34 = arith.constant 1.000000e+00 : f32
    %72 = vector.broadcast %cst_34 : f32 to vector<8x128xf32>
    %73 = arith.cmpf oge, %71, %72 : vector<8x128xf32>
    %74 = arith.extui %73 : vector<8x128xi1> to vector<8x128xi32>
    %75 = arith.sitofp %74 : vector<8x128xi32> to vector<8x128xf32>
    %76 = arith.index_cast %66 : i32 to index
    %c0_35 = arith.constant 0 : index
    %77 = vector.load %arg5[%76, %c0_35] : memref<32x128xf32, #tpu.memory_space<vmem>>, vector<8x128xf32>
    tpu.vector_store %arg5[%76, %c0_35], %75 {strides = array<i32>} : memref<32x128xf32, #tpu.memory_space<vmem>>, vector<8x128xf32>,
    %cst_36 = arith.constant 1.000000e+00 : f32
    %78 = vector.broadcast %cst_36 : f32 to vector<8x128xf32>
    %79 = arith.subf %71, %78 : vector<8x128xf32>
    %80 = arith.select %73, %79, %71 : vector<8x128xi1>, vector<8x128xf32>
    %81 = arith.index_cast %66 : i32 to index
    %c0_37 = arith.constant 0 : index
    %82 = vector.load %arg6[%81, %c0_37] : memref<32x128xf32, #tpu.memory_space<vmem>>, vector<8x128xf32>
    tpu.vector_store %arg6[%81, %c0_37], %80 {strides = array<i32>} : memref<32x128xf32, #tpu.memory_space<vmem>>, vector<8x128xf32>,
    %c4_i32 = arith.constant 4 : i32
    %c0_38 = arith.constant 0 : index
    %c0_39 = arith.constant 0 : index
    %83 = vector.load %arg7[%c0_38, %c0_39] : memref<8x128xf32, #tpu.memory_space<vmem>>, vector<8x128xf32>
    tpu.vector_store %arg7[%c0_38, %c0_39], %80 {strides = array<i32>} : memref<8x128xf32, #tpu.memory_space<vmem>>, vector<8x128xf32>,
    return
  }
  func.func @transform_0(%arg0: i32, %arg1: i32) -> (i32, i32) {
    %c0_i32 = arith.constant 0 : i32
    %c0_i32_0 = arith.constant 0 : i32
    return %arg1, %c0_i32 : i32, i32
  }
  func.func @transform_1(%arg0: i32, %arg1: i32) -> (i32, i32) {
    %c0_i32 = arith.constant 0 : i32
    %c0_i32_0 = arith.constant 0 : i32
    return %c0_i32, %arg0 : i32, i32
  }
  func.func @transform_2(%arg0: i32, %arg1: i32) -> (i32, i32) {
    %c0_i32 = arith.constant 0 : i32
    %c0_i32_0 = arith.constant 0 : i32
    return %c0_i32, %arg0 : i32, i32
  }
  func.func @transform_3(%arg0: i32, %arg1: i32) -> (i32, i32) {
    %c0_i32 = arith.constant 0 : i32
    return %arg1, %arg0 : i32, i32
  }
  func.func @transform_4(%arg0: i32, %arg1: i32) -> (i32, i32) {
    %c0_i32 = arith.constant 0 : i32
    return %arg1, %arg0 : i32, i32
  }
}

module attributes {stable_mosaic.version = 11 : i64} {
  func.func @_snn_leaky_kernel(%arg0: i32, %arg1: i32, %arg2: memref<32x64xf32, #tpu.memory_space<vmem>>, %arg3: memref<64x128xf32, #tpu.memory_space<vmem>>, %arg4: memref<1x128xf32, #tpu.memory_space<vmem>>, %arg5: memref<32x128xf32, #tpu.memory_space<vmem>>, %arg6: memref<32x128xf32, #tpu.memory_space<vmem>>, %arg7: memref<8x128xf32, #tpu.memory_space<vmem>>, %arg8: memref<32x128xf32, #tpu.memory_space<vmem>>) attributes {dimension_semantics = [#tpu.dimension_semantics<parallel>, #tpu.dimension_semantics<arbitrary>], iteration_bounds = array<i64: 1, 2>, scalar_prefetch = 0 : i64, scratch_operands = 2 : i64, tpu.core_type = #tpu.core_type<tc>, window_params = [{transform_indices = @transform_0, window_bounds = array<i64: 32, 64>}, {transform_indices = @transform_1, window_bounds = array<i64: 64, 128>}, {transform_indices = @transform_2, window_bounds = array<i64: 1, 128>}, {transform_indices = @transform_3, window_bounds = array<i64: 32, 128>}, {transform_indices = @transform_4, window_bounds = array<i64: 32, 128>}]} {
    %c0_i32 = arith.constant 0 : i32
    %0 = arith.cmpi eq, %arg1, %c0_i32 : i32
    %1 = arith.extui %0 : i1 to i32
    %c0_i32_0 = arith.constant 0 : i32
    %2 = arith.cmpi ne, %1, %c0_i32_0 : i32
    scf.if %2 {
      %cst_40 = arith.constant 0.000000e+00 : f32
      %84 = vector.broadcast %cst_40 : f32 to vector<8x128xf32>
      %c0_41 = arith.constant 0 : index
      %c0_42 = arith.constant 0 : index
      %85 = vector.load %arg7[%c0_41, %c0_42] : memref<8x128xf32, #tpu.memory_space<vmem>>, vector<8x128xf32>
      tpu.vector_store %arg7[%c0_41, %c0_42], %84 {strides = array<i32>} : memref<8x128xf32, #tpu.memory_space<vmem>>, vector<8x128xf32>,
    } else {
    }
    %c0 = arith.constant 0 : index
    %c0_1 = arith.constant 0 : index
    %3 = vector.load %arg2[%c0, %c0_1] : memref<32x64xf32, #tpu.memory_space<vmem>>, vector<32x64xf32>
    %c0_2 = arith.constant 0 : index
    %c0_3 = arith.constant 0 : index
    %4 = vector.load %arg3[%c0_2, %c0_3] : memref<64x128xf32, #tpu.memory_space<vmem>>, vector<64x128xf32>
    %cst = arith.constant dense<0.000000e+00> : vector<32x128xf32>
    %5 = tpu.matmul %3, %4, %cst {dimension_numbers = #tpu.dot_dimension_numbers<[1], [0], [0], [1], [0, 0, 1, 1], [], []>} : vector<32x64xf32>, vector<64x128xf32>, vector<32x128xf32> -> vector<32x128xf32>
    %c0_4 = arith.constant 0 : index
    %c0_5 = arith.constant 0 : index
    %6 = vector.load %arg4[%c0_4, %c0_5] : memref<1x128xf32, #tpu.memory_space<vmem>>, vector<1x128xf32>
    %7 = vector.broadcast %6 : vector<1x128xf32> to vector<32x128xf32>
    %8 = arith.addf %5, %7 : vector<32x128xf32>
    %c0_6 = arith.constant 0 : index
    %c0_7 = arith.constant 0 : index
    %9 = vector.load %arg8[%c0_6, %c0_7] : memref<32x128xf32, #tpu.memory_space<vmem>>, vector<32x128xf32>
    tpu.vector_store %arg8[%c0_6, %c0_7], %8 {strides = array<i32>} : memref<32x128xf32, #tpu.memory_space<vmem>>, vector<32x128xf32>,
    %c0_8 = arith.constant 0 : index
    %c0_9 = arith.constant 0 : index
    %10 = vector.load %arg7[%c0_8, %c0_9] : memref<8x128xf32, #tpu.memory_space<vmem>>, vector<8x128xf32>
    %c0_i32_10 = arith.constant 0 : i32
    %c8_i32 = arith.constant 8 : i32
    %11 = arith.muli %c0_i32_10, %c8_i32 : i32
    %12 = tpu.assume_multiple %11, 8 : i32
    %13 = arith.index_cast %12 : i32 to index
    %c0_11 = arith.constant 0 : index
    %14 = vector.load %arg8[%13, %c0_11] : memref<32x128xf32, #tpu.memory_space<vmem>>, vector<8x128xf32>
    %cst_12 = arith.constant 0.899999976 : f32
    %15 = vector.broadcast %cst_12 : f32 to vector<8x128xf32>
    %16 = arith.mulf %15, %10 : vector<8x128xf32>
    %17 = arith.addf %16, %14 : vector<8x128xf32>
    %cst_13 = arith.constant 1.000000e+00 : f32
    %18 = vector.broadcast %cst_13 : f32 to vector<8x128xf32>
    %19 = arith.cmpf oge, %17, %18 : vector<8x128xf32>
    %20 = arith.extui %19 : vector<8x128xi1> to vector<8x128xi32>
    %21 = arith.sitofp %20 : vector<8x128xi32> to vector<8x128xf32>
    %22 = arith.index_cast %12 : i32 to index
    %c0_14 = arith.constant 0 : index
    %23 = vector.load %arg5[%22, %c0_14] : memref<32x128xf32, #tpu.memory_space<vmem>>, vector<8x128xf32>
    tpu.vector_store %arg5[%22, %c0_14], %21 {strides = array<i32>} : memref<32x128xf32, #tpu.memory_space<vmem>>, vector<8x128xf32>,
    %cst_15 = arith.constant 1.000000e+00 : f32
    %24 = vector.broadcast %cst_15 : f32 to vector<8x128xf32>
    %25 = arith.subf %17, %24 : vector<8x128xf32>
    %26 = arith.select %19, %25, %17 : vector<8x128xi1>, vector<8x128xf32>
    %27 = arith.index_cast %12 : i32 to index
    %c0_16 = arith.constant 0 : index
    %28 = vector.load %arg6[%27, %c0_16] : memref<32x128xf32, #tpu.memory_space<vmem>>, vector<8x128xf32>
    tpu.vector_store %arg6[%27, %c0_16], %26 {strides = array<i32>} : memref<32x128xf32, #tpu.memory_space<vmem>>, vector<8x128xf32>,
    %c1_i32 = arith.constant 1 : i32
    %c8_i32_17 = arith.constant 8 : i32
    %29 = arith.muli %c1_i32, %c8_i32_17 : i32
    %30 = tpu.assume_multiple %29, 8 : i32
    %31 = arith.index_cast %30 : i32 to index
    %c0_18 = arith.constant 0 : index
    %32 = vector.load %arg8[%31, %c0_18] : memref<32x128xf32, #tpu.memory_space<vmem>>, vector<8x128xf32>
    %cst_19 = arith.constant 0.899999976 : f32
    %33 = vector.broadcast %cst_19 : f32 to vector<8x128xf32>
    %34 = arith.mulf %33, %26 : vector<8x128xf32>
    %35 = arith.addf %34, %32 : vector<8x128xf32>
    %cst_20 = arith.constant 1.000000e+00 : f32
    %36 = vector.broadcast %cst_20 : f32 to vector<8x128xf32>
    %37 = arith.cmpf oge, %35, %36 : vector<8x128xf32>
    %38 = arith.extui %37 : vector<8x128xi1> to vector<8x128xi32>
    %39 = arith.sitofp %38 : vector<8x128xi32> to vector<8x128xf32>
    %40 = arith.index_cast %30 : i32 to index
    %c0_21 = arith.constant 0 : index
    %41 = vector.load %arg5[%40, %c0_21] : memref<32x128xf32, #tpu.memory_space<vmem>>, vector<8x128xf32>
    tpu.vector_store %arg5[%40, %c0_21], %39 {strides = array<i32>} : memref<32x128xf32, #tpu.memory_space<vmem>>, vector<8x128xf32>,
    %cst_22 = arith.constant 1.000000e+00 : f32
    %42 = vector.broadcast %cst_22 : f32 to vector<8x128xf32>
    %43 = arith.subf %35, %42 : vector<8x128xf32>
    %44 = arith.select %37, %43, %35 : vector<8x128xi1>, vector<8x128xf32>
    %45 = arith.index_cast %30 : i32 to index
    %c0_23 = arith.constant 0 : index
    %46 = vector.load %arg6[%45, %c0_23] : memref<32x128xf32, #tpu.memory_space<vmem>>, vector<8x128xf32>
    tpu.vector_store %arg6[%45, %c0_23], %44 {strides = array<i32>} : memref<32x128xf32, #tpu.memory_space<vmem>>, vector<8x128xf32>,
    %c2_i32 = arith.constant 2 : i32
    %c8_i32_24 = arith.constant 8 : i32
    %47 = arith.muli %c2_i32, %c8_i32_24 : i32
    %48 = tpu.assume_multiple %47, 8 : i32
    %49 = arith.index_cast %48 : i32 to index
    %c0_25 = arith.constant 0 : index
    %50 = vector.load %arg8[%49, %c0_25] : memref<32x128xf32, #tpu.memory_space<vmem>>, vector<8x128xf32>
    %cst_26 = arith.constant 0.899999976 : f32
    %51 = vector.broadcast %cst_26 : f32 to vector<8x128xf32>
    %52 = arith.mulf %51, %44 : vector<8x128xf32>
    %53 = arith.addf %52, %50 : vector<8x128xf32>
    %cst_27 = arith.constant 1.000000e+00 : f32
    %54 = vector.broadcast %cst_27 : f32 to vector<8x128xf32>
    %55 = arith.cmpf oge, %53, %54 : vector<8x128xf32>
    %56 = arith.extui %55 : vector<8x128xi1> to vector<8x128xi32>
    %57 = arith.sitofp %56 : vector<8x128xi32> to vector<8x128xf32>
    %58 = arith.index_cast %48 : i32 to index
    %c0_28 = arith.constant 0 : index
    %59 = vector.load %arg5[%58, %c0_28] : memref<32x128xf32, #tpu.memory_space<vmem>>, vector<8x128xf32>
    tpu.vector_store %arg5[%58, %c0_28], %57 {strides = array<i32>} : memref<32x128xf32, #tpu.memory_space<vmem>>, vector<8x128xf32>,
    %cst_29 = arith.constant 1.000000e+00 : f32
    %60 = vector.broadcast %cst_29 : f32 to vector<8x128xf32>
    %61 = arith.subf %53, %60 : vector<8x128xf32>
    %62 = arith.select %55, %61, %53 : vector<8x128xi1>, vector<8x128xf32>
    %63 = arith.index_cast %48 : i32 to index
    %c0_30 = arith.constant 0 : index
    %64 = vector.load %arg6[%63, %c0_30] : memref<32x128xf32, #tpu.memory_space<vmem>>, vector<8x128xf32>
    tpu.vector_store %arg6[%63, %c0_30], %62 {strides = array<i32>} : memref<32x128xf32, #tpu.memory_space<vmem>>, vector<8x128xf32>,
    %c3_i32 = arith.constant 3 : i32
    %c8_i32_31 = arith.constant 8 : i32
    %65 = arith.muli %c3_i32, %c8_i32_31 : i32
    %66 = tpu.assume_multiple %65, 8 : i32
    %67 = arith.index_cast %66 : i32 to index
    %c0_32 = arith.constant 0 : index
    %68 = vector.load %arg8[%67, %c0_32] : memref<32x128xf32, #tpu.memory_space<vmem>>, vector<8x128xf32>
    %cst_33 = arith.constant 0.899999976 : f32
    %69 = vector.broadcast %cst_33 : f32 to vector<8x128xf32>
    %70 = arith.mulf %69, %62 : vector<8x128xf32>
    %71 = arith.addf %70, %68 : vector<8x128xf32>
    %cst_34 = arith.constant 1.000000e+00 : f32
    %72 = vector.broadcast %cst_34 : f32 to vector<8x128xf32>
    %73 = arith.cmpf oge, %71, %72 : vector<8x128xf32>
    %74 = arith.extui %73 : vector<8x128xi1> to vector<8x128xi32>
    %75 = arith.sitofp %74 : vector<8x128xi32> to vector<8x128xf32>
    %76 = arith.index_cast %66 : i32 to index
    %c0_35 = arith.constant 0 : index
    %77 = vector.load %arg5[%76, %c0_35] : memref<32x128xf32, #tpu.memory_space<vmem>>, vector<8x128xf32>
    tpu.vector_store %arg5[%76, %c0_35], %75 {strides = array<i32>} : memref<32x128xf32, #tpu.memory_space<vmem>>, vector<8x128xf32>,
    %cst_36 = arith.constant 1.000000e+00 : f32
    %78 = vector.broadcast %cst_36 : f32 to vector<8x128xf32>
    %79 = arith.subf %71, %78 : vector<8x128xf32>
    %80 = arith.select %73, %79, %71 : vector<8x128xi1>, vector<8x128xf32>
    %81 = arith.index_cast %66 : i32 to index
    %c0_37 = arith.constant 0 : index
    %82 = vector.load %arg6[%81, %c0_37] : memref<32x128xf32, #tpu.memory_space<vmem>>, vector<8x128xf32>
    tpu.vector_store %arg6[%81, %c0_37], %80 {strides = array<i32>} : memref<32x128xf32, #tpu.memory_space<vmem>>, vector<8x128xf32>,
    %c4_i32 = arith.constant 4 : i32
    %c0_38 = arith.constant 0 : index
    %c0_39 = arith.constant 0 : index
    %83 = vector.load %arg7[%c0_38, %c0_39] : memref<8x128xf32, #tpu.memory_space<vmem>>, vector<8x128xf32>
    tpu.vector_store %arg7[%c0_38, %c0_39], %80 {strides = array<i32>} : memref<8x128xf32, #tpu.memory_space<vmem>>, vector<8x128xf32>,
    return
  }
  func.func @transform_0(%arg0: i32, %arg1: i32) -> (i32, i32) {
    %c0_i32 = arith.constant 0 : i32
    %c0_i32_0 = arith.constant 0 : i32
    return %arg1, %c0_i32 : i32, i32
  }
  func.func @transform_1(%arg0: i32, %arg1: i32) -> (i32, i32) {
    %c0_i32 = arith.constant 0 : i32
    %c0_i32_0 = arith.constant 0 : i32
    return %c0_i32, %arg0 : i32, i32
  }
  func.func @transform_2(%arg0: i32, %arg1: i32) -> (i32, i32) {
    %c0_i32 = arith.constant 0 : i32
    %c0_i32_0 = arith.constant 0 : i32
    return %c0_i32, %arg0 : i32, i32
  }
  func.func @transform_3(%arg0: i32, %arg1: i32) -> (i32, i32) {
    %c0_i32 = arith.constant 0 : i32
    return %arg1, %arg0 : i32, i32
  }
  func.func @transform_4(%arg0: i32, %arg1: i32) -> (i32, i32) {
    %c0_i32 = arith.constant 0 : i32
    return %arg1, %arg0 : i32, i32
  }
}

</mosaic_0001>

<llo_original>
// kernel: tpu_custom_call.1
$region0: #{tpu_custom_call.1}
  #allocation0 [shape = 'u32[]', space=smem, size = 0x4, offset = 0x4, fixed_abs, tag = 'smem constant byte address 0x4 - core index']
  #allocation1 [shape = 'u32[144,128]{1,0:T(1,128)}', space=vmem, size = 0x12000, scoped, tag = 'internal scratch']
  #allocation2 [shape = 'f32[8,128]{1,0:T(8,128)}', space=vmem, size = 0x1000, scoped, tag = 'scratch operand']
  #allocation3 [shape = 'f32[32,128]{1,0:T(8,128)}', space=vmem, size = 0x4000, scoped, tag = 'scratch operand']
  %s0 = inlined_call_operand.hbm [shape: f32[64,64], index: 0, kind: input, shape index: {}]
  %s1 = inlined_call_operand.hbm [shape: f32[64,128], index: 1, kind: input, shape index: {}]
  %s2 = inlined_call_operand.vmem [shape: f32[1,128], index: 2, kind: input, shape index: {}]
  %s3 = inlined_call_operand.hbm [shape: f32[64,128], index: 3, kind: output, shape index: {0}]
  %s4 = inlined_call_operand.hbm [shape: f32[64,128], index: 4, kind: output, shape index: {1}]
  %5 = xla_tuple %s3, %s4
  %s6 = sld [smem:[#allocation0]]
  $region65: #{tpu_custom_call.1} parent=0
    _
  %s8 = ssub.s32 1, %s6
  %s9 = scalar_select 0, %s8, %s6
  $region1: #{tpu_custom_call.1} parent=0
    #allocation4 [shape = 'u8[32768]{0}', space=vmem, size = 0x8000, scoped, tag = 'input window, operand 0']
    #allocation5 [shape = 's32[2]{0}', space=sflag, size = 0x8, scoped, tag = 'scoped memory for tpu_custom_call.1']
    #allocation6 [shape = 's32[2]{0}', space=sflag, size = 0x8, scoped, tag = 'scoped memory for tpu_custom_call.1']
    #allocation7 [shape = 'u8[32768]{0}', space=vmem, size = 0x8000, scoped, tag = 'input window, operand 1, single buffered']
    #allocation8 [shape = 's32[1]{0}', space=sflag, size = 0x4, scoped, tag = 'scoped memory for tpu_custom_call.1']
    #allocation9 [shape = 'u8[32768]{0}', space=vmem, size = 0x8000, scoped, tag = 'output window, operand 0']
    #allocation10 [shape = 'u8[32768]{0}', space=vmem, size = 0x8000, scoped, tag = 'output window, operand 1']
    #allocation11 [shape = 's32[2]{0}', space=sflag, size = 0x8, scoped, tag = 'scoped memory for tpu_custom_call.1']
    %10 = vsyncpa [#allocation5], 0
    %s11 = scalar_lea.sflag [#allocation5], 1
    %12 = vsyncpa %s11, 0
    %13 = vsyncpa [#allocation8], 0
    %14 = vsyncpa [#allocation6], 0
    %s15 = scalar_lea.sflag [#allocation6], 1
    %16 = vsyncpa %s15, 0
    %17 = vsyncpa [#allocation11], 0
    %s18 = scalar_lea.sflag [#allocation11], 1
    %19 = vsyncpa %s18, 0
    loop: start=0, step=1, limit=4
    $region2: #{tpu_custom_call.1} parent=1 // loop_pre_header
      _
    $region3: #{tpu_custom_call.1} parent=1 // loop_header
      %s21 = sphi 0, %s25
      %p22 = scmp.ge.s32.totalorder %s21, 4
      %s28 = sphi 0, %s40
      %s29 = sphi 0, %s36
      %s30 = sphi 0, %s28
      %s31 = sphi 0, %s29
      %s32 = sphi 0, %s30
      %s33 = sphi 0, %s31
      %s43 = sphi 0, %s45
      %s46 = sphi 0, %s43
      %s47 = sphi 0, %s46
      %s63 = sphi 0, %s47
      %s69 = sphi 0, %s71
      %s72 = sphi 0, %s69
      %s73 = sphi 0, %s72
      %s89 = sphi 0, %s73
      %s95 = sphi 0, %s97
      %s98 = sphi 0, %s95
      %s99 = sphi 0, %s98
      %s115 = sphi 0, %s99
      %s123 = sphi 0, %s125
      %s126 = sphi 0, %s123
      %s127 = sphi 0, %s126
      %s143 = sphi 0, %s127
      %s151 = sphi 0, %s153
      %s154 = sphi 0, %s151
      %s155 = sphi 0, %s154
      %s171 = sphi 0, %s155
    $region4: #{tpu_custom_call.1} parent=1 // loop_header_branch
      %24 = sbr.rel (%p22) target = $region8
    $region5: #{tpu_custom_call.1} parent=1 // loop_body
      %s26 = ssub.s32 %s21, 1
      %s27 = ssub.s32 %s21, 2
      %s34 = sadd.s32 1, %s29
      %p35 = scmp.ge.s32.totalorder %s34, 2
      %s36 = scalar_select %p35, 0, %s34
      %s37 = sadd.s32 1, %s28
      %s38 = scalar_select %p35, %s37, %s28
      %p39 = scmp.ge.s32.totalorder %s38, 1
      %s40 = scalar_select %p39, 0, %s38
      %s41 = ssub.s32 %s29, %s36
      %p42 = scmp.eq.s32.totalorder %s41, 0
      %s44 = sadd.s32 %s43, 1
      %s45 = scalar_select %p42, %s43, %s44
      %p48 = pneg %p42
      %p49 = scmp.eq.s32.totalorder %s21, 1
      %p50 = por %p48, %p49
      %p51 = scmp.ne.s32.totalorder %s43, %s46
      %p52 = scmp.eq.s32.totalorder %s21, 0
      %p53 = por %p51, %p52
      %p54 = scmp.ne.s32.totalorder %s43, %s46
      %p55 = scmp.eq.s32.totalorder %s26, 1
      %p56 = por %p54, %p55
      %p57 = scmp.ne.s32.totalorder %s46, %s47
      %p58 = scmp.eq.s32.totalorder %s26, 0
      %p59 = por %p57, %p58
      %p60 = scmp.ne.s32.totalorder %s46, %s47
      %p61 = scmp.eq.s32.totalorder %s27, 1
      %p62 = por %p60, %p61
      %p64 = scmp.ne.s32.totalorder %s47, %s63
      %p65 = scmp.eq.s32.totalorder %s27, 0
      %p66 = por %p64, %p65
      %s67 = ssub.s32 %s28, %s40
      %p68 = scmp.eq.s32.totalorder %s67, 0
      %s70 = sadd.s32 %s69, 1
      %s71 = scalar_select %p68, %s69, %s70
      %p74 = pneg %p68
      %p75 = scmp.eq.s32.totalorder %s21, 1
      %p76 = por %p74, %p75
      %p77 = scmp.ne.s32.totalorder %s69, %s72
      %p78 = scmp.eq.s32.totalorder %s21, 0
      %p79 = por %p77, %p78
      %p80 = scmp.ne.s32.totalorder %s69, %s72
      %p81 = scmp.eq.s32.totalorder %s26, 1
      %p82 = por %p80, %p81
      %p83 = scmp.ne.s32.totalorder %s72, %s73
      %p84 = scmp.eq.s32.totalorder %s26, 0
      %p85 = por %p83, %p84
      %p86 = scmp.ne.s32.totalorder %s72, %s73
      %p87 = scmp.eq.s32.totalorder %s27, 1
      %p88 = por %p86, %p87
      %p90 = scmp.ne.s32.totalorder %s73, %s89
      %p91 = scmp.eq.s32.totalorder %s27, 0
      %p92 = por %p90, %p91
      %s93 = ssub.s32 %s28, %s40
      %p94 = scmp.eq.s32.totalorder %s93, 0
      %s96 = sadd.s32 %s95, 1
      %s97 = scalar_select %p94, %s95, %s96
      %p100 = pneg %p94
      %p101 = scmp.eq.s32.totalorder %s21, 1
      %p102 = por %p100, %p101
      %p103 = scmp.ne.s32.totalorder %s95, %s98
      %p104 = scmp.eq.s32.totalorder %s21, 0
      %p105 = por %p103, %p104
      %p106 = scmp.ne.s32.totalorder %s95, %s98
      %p107 = scmp.eq.s32.totalorder %s26, 1
      %p108 = por %p106, %p107
      %p109 = scmp.ne.s32.totalorder %s98, %s99
      %p110 = scmp.eq.s32.totalorder %s26, 0
      %p111 = por %p109, %p110
      %p112 = scmp.ne.s32.totalorder %s98, %s99
      %p113 = scmp.eq.s32.totalorder %s27, 1
      %p114 = por %p112, %p113
      %p116 = scmp.ne.s32.totalorder %s99, %s115
      %p117 = scmp.eq.s32.totalorder %s27, 0
      %p118 = por %p116, %p117
      %s119 = ssub.s32 %s29, %s36
      %s120 = ssub.s32 %s28, %s40
      %s121 = sor.u32 %s119, %s120
      %p122 = scmp.eq.s32.totalorder %s121, 0
      %s124 = sadd.s32 %s123, 1
      %s125 = scalar_select %p122, %s123, %s124
      %p128 = pneg %p122
      %p129 = scmp.eq.s32.totalorder %s21, 1
      %p130 = por %p128, %p129
      %p131 = scmp.ne.s32.totalorder %s123, %s126
      %p132 = scmp.eq.s32.totalorder %s21, 0
      %p133 = por %p131, %p132
      %p134 = scmp.ne.s32.totalorder %s123, %s126
      %p135 = scmp.eq.s32.totalorder %s26, 1
      %p136 = por %p134, %p135
      %p137 = scmp.ne.s32.totalorder %s126, %s127
      %p138 = scmp.eq.s32.totalorder %s26, 0
      %p139 = por %p137, %p138
      %p140 = scmp.ne.s32.totalorder %s126, %s127
      %p141 = scmp.eq.s32.totalorder %s27, 1
      %p142 = por %p140, %p141
      %p144 = scmp.ne.s32.totalorder %s127, %s143
      %p145 = scmp.eq.s32.totalorder %s27, 0
      %p146 = por %p144, %p145
      %s147 = ssub.s32 %s29, %s36
      %s148 = ssub.s32 %s28, %s40
      %s149 = sor.u32 %s147, %s148
      %p150 = scmp.eq.s32.totalorder %s149, 0
      %s152 = sadd.s32 %s151, 1
      %s153 = scalar_select %p150, %s151, %s152
      %p156 = pneg %p150
      %p157 = scmp.eq.s32.totalorder %s21, 1
      %p158 = por %p156, %p157
      %p159 = scmp.ne.s32.totalorder %s151, %s154
      %p160 = scmp.eq.s32.totalorder %s21, 0
      %p161 = por %p159, %p160
      %p162 = scmp.ne.s32.totalorder %s151, %s154
      %p163 = scmp.eq.s32.totalorder %s26, 1
      %p164 = por %p162, %p163
      %p165 = scmp.ne.s32.totalorder %s154, %s155
      %p166 = scmp.eq.s32.totalorder %s26, 0
      %p167 = por %p165, %p166
      %p168 = scmp.ne.s32.totalorder %s154, %s155
      %p169 = scmp.eq.s32.totalorder %s27, 1
      %p170 = por %p168, %p169
      %p172 = scmp.ne.s32.totalorder %s155, %s171
      %p173 = scmp.eq.s32.totalorder %s27, 0
      %p174 = por %p172, %p173
      %p175 = scmp.le.s32.totalorder 1, %s21
      %p176 = scmp.lt.s32.totalorder %s21, 3
      %p177 = pnand %p175, %p176
      %p178 = pneg %p177
      // Predicated region
      $region9: #{tpu_custom_call.1} parent=5 // pred_check
        _
      $region10: #{tpu_custom_call.1} parent=5 // pred_check_branch
        %180 = sbr.rel (%p177) target = $region12
      $region11: #{tpu_custom_call.1} parent=5 // pred_region
        %s181 = ssub.s32 %s21, 1
        // Predicated region
        $region13: #{tpu_custom_call.1} parent=11 // pred_check
          %p182 = pneg %p85
        $region14: #{tpu_custom_call.1} parent=11 // pred_check_branch
          %184 = sbr.rel (%p182) target = $region16
        $region15: #{tpu_custom_call.1} parent=11 // pred_region
          %s186 = ssub.s32 1024, 1024
          %187 = vsyncadd [#allocation8], %s186
          %s188 = smul.addr %s30, 128
          %s189 = scalar_lea.hbm %s1, %s188
          %s190 = sshll.u32 [#allocation7], 4
          %s191 = int_to_ptr.vmem [resolvable:$true] %s190
          %196 = dma.hbm_to_vmem [thread:$0]  %s189, 1024, %s191, [#allocation8], 128, 128, 8
        $region16: #{tpu_custom_call.1} parent=11 // pred_fallthru
          _
        // Predicated region
        $region17: #{tpu_custom_call.1} parent=11 // pred_check
          %p197 = pneg %p111
        $region18: #{tpu_custom_call.1} parent=11 // pred_check_branch
          %199 = sbr.rel (%p197) target = $region20
        $region19: #{tpu_custom_call.1} parent=11 // pred_region
          %p200 = scmp.lt.s32.totalorder %s30, 0
          %s201 = scalar_select %p200, %s30, 0
          %s202 = scalar_lea.vmem %s2, %s201
        $region20: #{tpu_custom_call.1} parent=11 // pred_fallthru
          _
      $region12: #{tpu_custom_call.1} parent=5 // pred_fallthru
        _
      %p203 = scmp.lt.s32.totalorder %s21, 2
      // Predicated region
      $region21: #{tpu_custom_call.1} parent=5 // pred_check
        %p204 = pneg %p203
      $region22: #{tpu_custom_call.1} parent=5 // pred_check_branch
        %206 = sbr.rel (%p204) target = $region24
      $region23: #{tpu_custom_call.1} parent=5 // pred_region
        // Predicated region
        $region25: #{tpu_custom_call.1} parent=23 // pred_check
          %p207 = pneg %p53
        $region26: #{tpu_custom_call.1} parent=23 // pred_check_branch
          %209 = sbr.rel (%p207) target = $region28
        $region27: #{tpu_custom_call.1} parent=23 // pred_region
          %s210 = sand.u32 %s43, 1
          %s211 = scalar_lea.sflag [#allocation5], %s210
          %s212 = sand.u32 %s43, 1
          %s213 = smul.addr %s212, 32
          %s214 = scalar_lea.vmem [#allocation4], %s213
          %s215 = smul.u32 4, %s29
          %s217 = ssub.s32 512, 512
          %218 = vsyncadd %s211, %s217
          %s219 = smul.addr %s215, 128
          %s220 = scalar_lea.hbm %s0, %s219
          %s221 = sshll.u32 %s214, 4
          %s222 = int_to_ptr.vmem [resolvable:$true] %s221
          %227 = dma.hbm_to_vmem [thread:$0]  %s220, 512, %s222, %s211, 128, 128, 8
        $region28: #{tpu_custom_call.1} parent=23 // pred_fallthru
          _
      $region24: #{tpu_custom_call.1} parent=5 // pred_fallthru
        _
      %p228 = scmp.le.s32.totalorder 1, %s21
      %p229 = scmp.lt.s32.totalorder %s21, 3
      %p230 = pnand %p228, %p229
      %p231 = pneg %p230
      // Predicated region
      $region29: #{tpu_custom_call.1} parent=5 // pred_check
        _
      $region30: #{tpu_custom_call.1} parent=5 // pred_check_branch
        %233 = sbr.rel (%p230) target = $region32
      $region31: #{tpu_custom_call.1} parent=5 // pred_region
        %s234 = ssub.s32 %s21, 1
        %s235 = sand.u32 %s46, 1
        %s236 = scalar_lea.sflag [#allocation5], %s235
        %s237 = sand.u32 %s46, 1
        %s238 = smul.addr %s237, 32
        %s239 = scalar_lea.vmem [#allocation4], %s238
        // Predicated region
        $region33: #{tpu_custom_call.1} parent=31 // pred_check
          %p240 = pneg %p59
        $region34: #{tpu_custom_call.1} parent=31 // pred_check_branch
          %242 = sbr.rel (%p240) target = $region36
        $region35: #{tpu_custom_call.1} parent=31 // pred_region
          %243 = dma.done %s236, 512
        $region36: #{tpu_custom_call.1} parent=31 // pred_fallthru
          _
        // Predicated region
        $region37: #{tpu_custom_call.1} parent=31 // pred_check
          %p244 = pneg %p85
        $region38: #{tpu_custom_call.1} parent=31 // pred_check_branch
          %246 = sbr.rel (%p244) target = $region40
        $region39: #{tpu_custom_call.1} parent=31 // pred_region
          %247 = dma.done [#allocation8], 1024
        $region40: #{tpu_custom_call.1} parent=31 // pred_fallthru
          _
        %s248 = sand.u32 %s46, 1
        %s249 = scalar_lea.sflag [#allocation5], %s248
        %s250 = sand.u32 %s46, 1
        %s251 = smul.addr %s250, 32
        %s252 = scalar_lea.vmem [#allocation4], %s251
        %p253 = pneg %p59
        %p254 = pneg %p56
        %p255 = pneg %p85
        %p256 = pneg %p82
        %p257 = scmp.lt.s32.totalorder %s30, 0
        %s258 = scalar_select %p257, %s30, 0
        %s259 = scalar_lea.vmem %s2, %s258
        %p260 = pneg %p111
        %p261 = pneg %p108
        %p262 = pneg %p139
        %p263 = pneg %p136
        %s264 = sand.u32 %s126, 1
        %s265 = scalar_lea.sflag [#allocation6], %s264
        %s266 = sand.u32 %s126, 1
        %s267 = smul.addr %s266, 32
        %s268 = scalar_lea.vmem [#allocation9], %s267
        %p269 = pneg %p167
        %p270 = pneg %p164
        %s271 = sand.u32 %s154, 1
        %s272 = scalar_lea.sflag [#allocation11], %s271
        %s273 = sand.u32 %s154, 1
        %s274 = smul.addr %s273, 32
        %s275 = scalar_lea.vmem [#allocation10], %s274
        %s276 = smul.u32 4, %s31
        %p277 = scmp.lt.s32.totalorder %s30, 0
        %s278 = scalar_select %p277, %s30, 0
        %s279 = scalar_lea.vmem %s2, %s278
        %s280 = smul.u32 4, %s31
        %s281 = smul.u32 4, %s31
        %p282 = scmp.eq.s32.totalorder %s31, 0
        // Predicated region
        $region41: #{tpu_custom_call.1} parent=31 // pred_check
          %p283 = pneg %p282
        $region42: #{tpu_custom_call.1} parent=31 // pred_check_branch
          %285 = sbr.rel (%p283) target = $region44
        $region43: #{tpu_custom_call.1} parent=31 // pred_region
          %286 = vst [vmem:[#allocation2] sm:$0xff] 0.0
        $region44: #{tpu_custom_call.1} parent=31 // pred_fallthru
          _
        %v287 = vld [vmem:[%s239] sm:$0xff]
        %v288 = vld [vmem:[%s239 + $0x8] sm:$0xff]
        %v289 = vld [vmem:[%s239 + $0x10] sm:$0xff]
        %v290 = vld [vmem:[%s239 + $0x18] sm:$0xff]
        %v291 = vld [vmem:[#allocation7] sm:$0xff]
        %v292 = vld [vmem:[#allocation7 + $0x8] sm:$0xff]
        %v293 = vld [vmem:[#allocation7 + $0x10] sm:$0xff]
        %v294 = vld [vmem:[#allocation7 + $0x18] sm:$0xff]
        %v295 = vld [vmem:[#allocation7 + $0x20] sm:$0xff]
        %v296 = vld [vmem:[#allocation7 + $0x28] sm:$0xff]
        %v297 = vld [vmem:[#allocation7 + $0x30] sm:$0xff]
        %v298 = vld [vmem:[#allocation7 + $0x38] sm:$0xff]
        %v299 = vld [vmem:[%s279] sm:$0x1]
        %v301 = vlaneseq
        %v302 = vshrl.u32 %v301, 7
        %v303 = vsub.s32 0, %v302
        %v304 = vrot.slane %v299, %v303
        %vm306 = vcmask 523264
        %v308 = vsel %vm306, %v287, 0
        %v311 = vsel %vm306, %v288, 0
        %v314 = vsel %vm306, %v289, 0
        %v317 = vsel %vm306, %v290, 0
        %319 = vmatprep.subr.mxu0 0.0
        %320 = vmatpush1.msra.mxu0 %v291
        %321 = vmatprep.subr.mxu0 0.0
        %322 = vmatpush1.msra.mxu0 %v292
        %323 = vmatprep.subr.mxu0 0.0
        %324 = vmatpush1.msra.mxu0 %v293
        %325 = vmatprep.subr.mxu0 0.0
        %326 = vmatpush1.msra.mxu0 %v294
        %327 = vmatprep.subr.mxu0 0.0
        %328 = vmatpush1.msra.mxu0 %v295
        %329 = vmatprep.subr.mxu0 0.0
        %330 = vmatpush1.msra.mxu0 %v296
        %331 = vmatprep.subr.mxu0 0.0
        %332 = vmatpush1.msra.mxu0 %v297
        %333 = vmatprep.subr.mxu0 0.0
        %334 = vmatpush1.msra.mxu0 %v298
        %335 = vmatprep.subr.mxu0 0.0
        %336 = vmatpush1.msra.mxu0 0.0
        %337 = vmatprep.subr.mxu0 0.0
        %338 = vmatpush1.msra.mxu0 0.0
        %339 = vmatprep.subr.mxu0 0.0
        %340 = vmatpush1.msra.mxu0 0.0
        %341 = vmatprep.subr.mxu0 0.0
        %342 = vmatpush1.msra.mxu0 0.0
        %343 = vmatprep.subr.mxu0 0.0
        %344 = vmatpush1.msra.mxu0 0.0
        %345 = vmatprep.subr.mxu0 0.0
        %346 = vmatpush1.msra.mxu0 0.0
        %347 = vmatprep.subr.mxu0 0.0
        %348 = vmatpush1.msra.mxu0 0.0
        %349 = vmatprep.subr.mxu0 0.0
        %350 = vmatpush1.msra.mxu0 0.0
        %351 = vmatprep.subr.mxu0 0.0
        %352 = vmatpush1.msra.mxu0 0.0
        %353 = vmatprep.subr.mxu0 0.0
        %354 = vmatpush1.msra.mxu0 0.0
        %355 = vmatprep.subr.mxu0 0.0
        %356 = vmatpush1.msra.mxu0 0.0
        %357 = vmatprep.subr.mxu0 0.0
        %358 = vmatpush1.msra.mxu0 0.0
        %359 = vmatprep.subr.mxu0 0.0
        %360 = vmatpush1.msra.mxu0 0.0
        %361 = vmatprep.subr.mxu0 0.0
        %362 = vmatpush1.msra.mxu0 0.0
        %363 = vmatprep.subr.mxu0 0.0
        %364 = vmatpush1.msra.mxu0 0.0
        %365 = vmatprep.subr.mxu0 0.0
        %366 = vmatpush1.msra.mxu0 0.0
        %367 = vmatprep.subr.mxu0 0.0
        %368 = vmatpush1.msra.mxu0 0.0
        %369 = vmatprep.subr.mxu0 0.0
        %370 = vmatpush1.msra.mxu0 0.0
        %371 = vmatprep.subr.mxu0 0.0
        %372 = vmatpush1.msra.mxu0 0.0
        %373 = vmatprep.subr.mxu0 0.0
        %374 = vmatpush1.msra.mxu0 0.0
        %375 = vmatprep.subr.mxu0 0.0
        %376 = vmatpush1.msra.mxu0 0.0
        %377 = vmatprep.subr.mxu0 0.0
        %378 = vmatpush1.msra.mxu0 0.0
        %379 = vmatprep.subr.mxu0 0.0
        %380 = vmatpush1.msra.mxu0 0.0
        %381 = vmatprep.subr.mxu0 0.0
        %382 = vmatpush1.msra.mxu0 0.0
        %383 = vmatprep.mubr.f32.mxu0 0.0
        %384 = vmatmul.mubr.f32.gmra.mrb[0].mxu0 %v308
        %v385 = vpop.f32.mrb[0].mxu0
        %v386 = vadd.f32 %v304, %v385
        %v387 = vpop.f32.mrb[0].mxu0
        %388 = vmatprep.mubr.f32.mxu0 0.0
        %389 = vmatmul.mubr.f32.gmra.mrb[0].mxu0 %v311
        %v390 = vpop.f32.mrb[0].mxu0
        %v391 = vadd.f32 %v304, %v390
        %v392 = vpop.f32.mrb[0].mxu0
        %393 = vmatprep.mubr.f32.mxu0 0.0
        %394 = vmatmul.mubr.f32.gmra.mrb[0].mxu0 %v314
        %v395 = vpop.f32.mrb[0].mxu0
        %v396 = vadd.f32 %v304, %v395
        %v397 = vpop.f32.mrb[0].mxu0
        %398 = vmatprep.mubr.f32.mxu0 0.0
        %399 = vmatmul.mubr.f32.gmra.mrb[0].mxu0 %v317
        %v400 = vpop.f32.mrb[0].mxu0
        %v401 = vadd.f32 %v304, %v400
        %v402 = vpop.f32.mrb[0].mxu0
        %403 = vdwg.mxu0
        %404 = vst [vmem:[#allocation3] sm:$0xff] %v386
        %405 = vst [vmem:[#allocation3 + $0x8] sm:$0xff] %v391
        %406 = vst [vmem:[#allocation3 + $0x10] sm:$0xff] %v396
        %407 = vst [vmem:[#allocation3 + $0x18] sm:$0xff] %v401
        %v408 = vld [vmem:[#allocation2] sm:$0xff]
        %v409 = vld [vmem:[#allocation3] sm:$0xff]
        %v410 = vmul.f32 %v408, 0.9
        %v411 = vadd.f32 %v410, %v409
        %vm412 = vcmp.ge.f32.partialorder %v411, 1.0
        %v413 = vsel %vm412, 1, 0
        %v414 = vcvt.s32.f32 %v413
        %415 = vst [vmem:[%s268] sm:$0xff] %v414
        %v416 = vsub.f32 %v411, 1.0
        %v417 = vsel %vm412, %v416, %v411
        %418 = vst [vmem:[%s275] sm:$0xff] %v417
        %s419 = scalar_lea.vmem [#allocation3], 8
        %v420 = vld [vmem:[%s419] sm:$0xff]
        %v421 = vmul.f32 %v417, 0.9
        %v422 = vadd.f32 %v421, %v420
        %vm423 = vcmp.ge.f32.partialorder %v422, 1.0
        %v424 = vsel %vm423, 1, 0
        %v425 = vcvt.s32.f32 %v424
        %s426 = scalar_lea.vmem %s268, 8 [#allocation9]
        %427 = vst [vmem:[%s426] sm:$0xff] %v425
        %v428 = vsub.f32 %v422, 1.0
        %v429 = vsel %vm423, %v428, %v422
        %s430 = scalar_lea.vmem %s275, 8 [#allocation10]
        %431 = vst [vmem:[%s430] sm:$0xff] %v429
        %s432 = scalar_lea.vmem [#allocation3], 16
        %v433 = vld [vmem:[%s432] sm:$0xff]
        %v434 = vmul.f32 %v429, 0.9
        %v435 = vadd.f32 %v434, %v433
        %vm436 = vcmp.ge.f32.partialorder %v435, 1.0
        %v437 = vsel %vm436, 1, 0
        %v438 = vcvt.s32.f32 %v437
        %s439 = scalar_lea.vmem %s268, 16 [#allocation9]
        %440 = vst [vmem:[%s439] sm:$0xff] %v438
        %v441 = vsub.f32 %v435, 1.0
        %v442 = vsel %vm436, %v441, %v435
        %s443 = scalar_lea.vmem %s275, 16 [#allocation10]
        %444 = vst [vmem:[%s443] sm:$0xff] %v442
        %s445 = scalar_lea.vmem [#allocation3], 24
        %v446 = vld [vmem:[%s445] sm:$0xff]
        %v447 = vmul.f32 %v442, 0.9
        %v448 = vadd.f32 %v447, %v446
        %vm449 = vcmp.ge.f32.partialorder %v448, 1.0
        %v450 = vsel %vm449, 1, 0
        %v451 = vcvt.s32.f32 %v450
        %s452 = scalar_lea.vmem %s268, 24 [#allocation9]
        %453 = vst [vmem:[%s452] sm:$0xff] %v451
        %v454 = vsub.f32 %v448, 1.0
        %v455 = vsel %vm449, %v454, %v448
        %s456 = scalar_lea.vmem %s275, 24 [#allocation10]
        %457 = vst [vmem:[%s456] sm:$0xff] %v455
        %458 = vst [vmem:[#allocation2] sm:$0xff] %v455
        %s459 = sand.u32 %s126, 1
        %s460 = scalar_lea.sflag [#allocation6], %s459
        %s461 = sand.u32 %s126, 1
        %s462 = smul.addr %s461, 32
        %s463 = scalar_lea.vmem [#allocation9], %s462
        %s464 = sand.u32 %s154, 1
        %s465 = scalar_lea.sflag [#allocation11], %s464
        %s466 = sand.u32 %s154, 1
        %s467 = smul.addr %s466, 32
        %s468 = scalar_lea.vmem [#allocation10], %s467
        // Predicated region
        $region45: #{tpu_custom_call.1} parent=31 // pred_check
          %p469 = pneg %p136
        $region46: #{tpu_custom_call.1} parent=31 // pred_check_branch
          %471 = sbr.rel (%p469) target = $region48
        $region47: #{tpu_custom_call.1} parent=31 // pred_region
          %s472 = smul.u32 4, %s31
          %s474 = ssub.s32 512, 512
          %475 = vsyncadd %s460, %s474
          %s476 = sadd.s32 %s30, %s472
          %s477 = smul.addr %s476, 128
          %s478 = scalar_lea.hbm %s3, %s477
          %s479 = sshll.u32 %s463, 4
          %s480 = int_to_ptr.vmem [resolvable:$true] %s479
          %485 = dma.vmem_to_hbm [thread:$0]  %s480, 512, %s478, %s460, 128, 128, 8
        $region48: #{tpu_custom_call.1} parent=31 // pred_fallthru
          _
        // Predicated region
        $region49: #{tpu_custom_call.1} parent=31 // pred_check
          %p486 = pneg %p164
        $region50: #{tpu_custom_call.1} parent=31 // pred_check_branch
          %488 = sbr.rel (%p486) target = $region52
        $region51: #{tpu_custom_call.1} parent=31 // pred_region
          %s489 = smul.u32 4, %s31
          %s491 = ssub.s32 512, 512
          %492 = vsyncadd %s465, %s491
          %s493 = sadd.s32 %s30, %s489
          %s494 = smul.addr %s493, 128
          %s495 = scalar_lea.hbm %s4, %s494
          %s496 = sshll.u32 %s468, 4
          %s497 = int_to_ptr.vmem [resolvable:$true] %s496
          %502 = dma.vmem_to_hbm [thread:$0]  %s497, 512, %s495, %s465, 128, 128, 8
        $region52: #{tpu_custom_call.1} parent=31 // pred_fallthru
          _
      $region32: #{tpu_custom_call.1} parent=5 // pred_fallthru
        _
      %p503 = scmp.le.s32.totalorder 2, %s21
      // Predicated region
      $region53: #{tpu_custom_call.1} parent=5 // pred_check
        %p504 = pneg %p503
      $region54: #{tpu_custom_call.1} parent=5 // pred_check_branch
        %506 = sbr.rel (%p504) target = $region56
      $region55: #{tpu_custom_call.1} parent=5 // pred_region
        %s507 = ssub.s32 %s21, 2
        // Predicated region
        $region57: #{tpu_custom_call.1} parent=55 // pred_check
          %p508 = pneg %p142
        $region58: #{tpu_custom_call.1} parent=55 // pred_check_branch
          %510 = sbr.rel (%p508) target = $region60
        $region59: #{tpu_custom_call.1} parent=55 // pred_region
          %s511 = sand.u32 %s127, 1
          %s512 = scalar_lea.sflag [#allocation6], %s511
          %s513 = sand.u32 %s127, 1
          %s514 = smul.addr %s513, 32
          %s515 = scalar_lea.vmem [#allocation9], %s514
          %516 = dma.done %s512, 512
        $region60: #{tpu_custom_call.1} parent=55 // pred_fallthru
          _
        // Predicated region
        $region61: #{tpu_custom_call.1} parent=55 // pred_check
          %p517 = pneg %p170
        $region62: #{tpu_custom_call.1} parent=55 // pred_check_branch
          %519 = sbr.rel (%p517) target = $region64
        $region63: #{tpu_custom_call.1} parent=55 // pred_region
          %s520 = sand.u32 %s155, 1
          %s521 = scalar_lea.sflag [#allocation11], %s520
          %s522 = sand.u32 %s155, 1
          %s523 = smul.addr %s522, 32
          %s524 = scalar_lea.vmem [#allocation10], %s523
          %525 = dma.done %s521, 512
        $region64: #{tpu_custom_call.1} parent=55 // pred_fallthru
          _
      $region56: #{tpu_custom_call.1} parent=5 // pred_fallthru
        _
    $region6: #{tpu_custom_call.1} parent=1 // loop_footer
      %s25 = sadd.s32 1, %s21
    $region7: #{tpu_custom_call.1} parent=1 // loop_footer_branch
      %20 = sbr.rel target = $region3
    $region8: #{tpu_custom_call.1} parent=1 // loop_exit
      _
    %526 = vsyncpa [#allocation5], 1
    %s527 = scalar_lea.sflag [#allocation5], 1
    %528 = vsyncpa %s527, 1
    %529 = vsyncpa [#allocation8], 1
    %530 = vsyncpa [#allocation6], 1
    %s531 = scalar_lea.sflag [#allocation6], 1
    %532 = vsyncpa %s531, 1
    %533 = vsyncpa [#allocation11], 1
    %s534 = scalar_lea.sflag [#allocation11], 1
    %535 = vsyncpa %s534, 1

// kernel: tpu_custom_call.1
$region0: #{tpu_custom_call.1}
  #allocation0 [shape = 'u32[]', space=smem, size = 0x4, offset = 0x4, fixed_abs, tag = 'smem constant byte address 0x4 - core index']
  #allocation1 [shape = 'u32[144,128]{1,0:T(1,128)}', space=vmem, size = 0x12000, scoped, tag = 'internal scratch']
  #allocation2 [shape = 'f32[8,128]{1,0:T(8,128)}', space=vmem, size = 0x1000, scoped, tag = 'scratch operand']
  #allocation3 [shape = 'f32[32,128]{1,0:T(8,128)}', space=vmem, size = 0x4000, scoped, tag = 'scratch operand']
  %s0 = inlined_call_operand.hbm [shape: f32[64,64], index: 0, kind: input, shape index: {}]
  %s1 = inlined_call_operand.hbm [shape: f32[64,128], index: 1, kind: input, shape index: {}]
  %s2 = inlined_call_operand.vmem [shape: f32[1,128], index: 2, kind: input, shape index: {}]
  %s3 = inlined_call_operand.hbm [shape: f32[64,128], index: 3, kind: output, shape index: {0}]
  %s4 = inlined_call_operand.hbm [shape: f32[64,128], index: 4, kind: output, shape index: {1}]
  %5 = xla_tuple %s3, %s4
  %s6 = sld [smem:[#allocation0]]
  $region65: #{tpu_custom_call.1} parent=0
    _
  %s8 = ssub.s32 1, %s6
  %s9 = scalar_select 0, %s8, %s6
  $region1: #{tpu_custom_call.1} parent=0
    #allocation4 [shape = 'u8[32768]{0}', space=vmem, size = 0x8000, scoped, tag = 'input window, operand 0']
    #allocation5 [shape = 's32[2]{0}', space=sflag, size = 0x8, scoped, tag = 'scoped memory for tpu_custom_call.1']
    #allocation6 [shape = 's32[2]{0}', space=sflag, size = 0x8, scoped, tag = 'scoped memory for tpu_custom_call.1']
    #allocation7 [shape = 'u8[32768]{0}', space=vmem, size = 0x8000, scoped, tag = 'input window, operand 1, single buffered']
    #allocation8 [shape = 's32[1]{0}', space=sflag, size = 0x4, scoped, tag = 'scoped memory for tpu_custom_call.1']
    #allocation9 [shape = 'u8[32768]{0}', space=vmem, size = 0x8000, scoped, tag = 'output window, operand 0']
    #allocation10 [shape = 'u8[32768]{0}', space=vmem, size = 0x8000, scoped, tag = 'output window, operand 1']
    #allocation11 [shape = 's32[2]{0}', space=sflag, size = 0x8, scoped, tag = 'scoped memory for tpu_custom_call.1']
    %10 = vsyncpa [#allocation5], 0
    %s11 = scalar_lea.sflag [#allocation5], 1
    %12 = vsyncpa %s11, 0
    %13 = vsyncpa [#allocation8], 0
    %14 = vsyncpa [#allocation6], 0
    %s15 = scalar_lea.sflag [#allocation6], 1
    %16 = vsyncpa %s15, 0
    %17 = vsyncpa [#allocation11], 0
    %s18 = scalar_lea.sflag [#allocation11], 1
    %19 = vsyncpa %s18, 0
    loop: start=0, step=1, limit=4
    $region2: #{tpu_custom_call.1} parent=1 // loop_pre_header
      _
    $region3: #{tpu_custom_call.1} parent=1 // loop_header
      %s21 = sphi 0, %s25
      %p22 = scmp.ge.s32.totalorder %s21, 4
      %s28 = sphi 0, %s40
      %s29 = sphi 0, %s36
      %s30 = sphi 0, %s28
      %s31 = sphi 0, %s29
      %s32 = sphi 0, %s30
      %s33 = sphi 0, %s31
      %s43 = sphi 0, %s45
      %s46 = sphi 0, %s43
      %s47 = sphi 0, %s46
      %s63 = sphi 0, %s47
      %s69 = sphi 0, %s71
      %s72 = sphi 0, %s69
      %s73 = sphi 0, %s72
      %s89 = sphi 0, %s73
      %s95 = sphi 0, %s97
      %s98 = sphi 0, %s95
      %s99 = sphi 0, %s98
      %s115 = sphi 0, %s99
      %s123 = sphi 0, %s125
      %s126 = sphi 0, %s123
      %s127 = sphi 0, %s126
      %s143 = sphi 0, %s127
      %s151 = sphi 0, %s153
      %s154 = sphi 0, %s151
      %s155 = sphi 0, %s154
      %s171 = sphi 0, %s155
    $region4: #{tpu_custom_call.1} parent=1 // loop_header_branch
      %24 = sbr.rel (%p22) target = $region8
    $region5: #{tpu_custom_call.1} parent=1 // loop_body
      %s26 = ssub.s32 %s21, 1
      %s27 = ssub.s32 %s21, 2
      %s34 = sadd.s32 1, %s29
      %p35 = scmp.ge.s32.totalorder %s34, 2
      %s36 = scalar_select %p35, 0, %s34
      %s37 = sadd.s32 1, %s28
      %s38 = scalar_select %p35, %s37, %s28
      %p39 = scmp.ge.s32.totalorder %s38, 1
      %s40 = scalar_select %p39, 0, %s38
      %s41 = ssub.s32 %s29, %s36
      %p42 = scmp.eq.s32.totalorder %s41, 0
      %s44 = sadd.s32 %s43, 1
      %s45 = scalar_select %p42, %s43, %s44
      %p48 = pneg %p42
      %p49 = scmp.eq.s32.totalorder %s21, 1
      %p50 = por %p48, %p49
      %p51 = scmp.ne.s32.totalorder %s43, %s46
      %p52 = scmp.eq.s32.totalorder %s21, 0
      %p53 = por %p51, %p52
      %p54 = scmp.ne.s32.totalorder %s43, %s46
      %p55 = scmp.eq.s32.totalorder %s26, 1
      %p56 = por %p54, %p55
      %p57 = scmp.ne.s32.totalorder %s46, %s47
      %p58 = scmp.eq.s32.totalorder %s26, 0
      %p59 = por %p57, %p58
      %p60 = scmp.ne.s32.totalorder %s46, %s47
      %p61 = scmp.eq.s32.totalorder %s27, 1
      %p62 = por %p60, %p61
      %p64 = scmp.ne.s32.totalorder %s47, %s63
      %p65 = scmp.eq.s32.totalorder %s27, 0
      %p66 = por %p64, %p65
      %s67 = ssub.s32 %s28, %s40
      %p68 = scmp.eq.s32.totalorder %s67, 0
      %s70 = sadd.s32 %s69, 1
      %s71 = scalar_select %p68, %s69, %s70
      %p74 = pneg %p68
      %p75 = scmp.eq.s32.totalorder %s21, 1
      %p76 = por %p74, %p75
      %p77 = scmp.ne.s32.totalorder %s69, %s72
      %p78 = scmp.eq.s32.totalorder %s21, 0
      %p79 = por %p77, %p78
      %p80 = scmp.ne.s32.totalorder %s69, %s72
      %p81 = scmp.eq.s32.totalorder %s26, 1
      %p82 = por %p80, %p81
      %p83 = scmp.ne.s32.totalorder %s72, %s73
      %p84 = scmp.eq.s32.totalorder %s26, 0
      %p85 = por %p83, %p84
      %p86 = scmp.ne.s32.totalorder %s72, %s73
      %p87 = scmp.eq.s32.totalorder %s27, 1
      %p88 = por %p86, %p87
      %p90 = scmp.ne.s32.totalorder %s73, %s89
      %p91 = scmp.eq.s32.totalorder %s27, 0
      %p92 = por %p90, %p91
      %s93 = ssub.s32 %s28, %s40
      %p94 = scmp.eq.s32.totalorder %s93, 0
      %s96 = sadd.s32 %s95, 1
      %s97 = scalar_select %p94, %s95, %s96
      %p100 = pneg %p94
      %p101 = scmp.eq.s32.totalorder %s21, 1
      %p102 = por %p100, %p101
      %p103 = scmp.ne.s32.totalorder %s95, %s98
      %p104 = scmp.eq.s32.totalorder %s21, 0
      %p105 = por %p103, %p104
      %p106 = scmp.ne.s32.totalorder %s95, %s98
      %p107 = scmp.eq.s32.totalorder %s26, 1
      %p108 = por %p106, %p107
      %p109 = scmp.ne.s32.totalorder %s98, %s99
      %p110 = scmp.eq.s32.totalorder %s26, 0
      %p111 = por %p109, %p110
      %p112 = scmp.ne.s32.totalorder %s98, %s99
      %p113 = scmp.eq.s32.totalorder %s27, 1
      %p114 = por %p112, %p113
      %p116 = scmp.ne.s32.totalorder %s99, %s115
      %p117 = scmp.eq.s32.totalorder %s27, 0
      %p118 = por %p116, %p117
      %s119 = ssub.s32 %s29, %s36
      %s120 = ssub.s32 %s28, %s40
      %s121 = sor.u32 %s119, %s120
      %p122 = scmp.eq.s32.totalorder %s121, 0
      %s124 = sadd.s32 %s123, 1
      %s125 = scalar_select %p122, %s123, %s124
      %p128 = pneg %p122
      %p129 = scmp.eq.s32.totalorder %s21, 1
      %p130 = por %p128, %p129
      %p131 = scmp.ne.s32.totalorder %s123, %s126
      %p132 = scmp.eq.s32.totalorder %s21, 0
      %p133 = por %p131, %p132
      %p134 = scmp.ne.s32.totalorder %s123, %s126
      %p135 = scmp.eq.s32.totalorder %s26, 1
      %p136 = por %p134, %p135
      %p137 = scmp.ne.s32.totalorder %s126, %s127
      %p138 = scmp.eq.s32.totalorder %s26, 0
      %p139 = por %p137, %p138
      %p140 = scmp.ne.s32.totalorder %s126, %s127
      %p141 = scmp.eq.s32.totalorder %s27, 1
      %p142 = por %p140, %p141
      %p144 = scmp.ne.s32.totalorder %s127, %s143
      %p145 = scmp.eq.s32.totalorder %s27, 0
      %p146 = por %p144, %p145
      %s147 = ssub.s32 %s29, %s36
      %s148 = ssub.s32 %s28, %s40
      %s149 = sor.u32 %s147, %s148
      %p150 = scmp.eq.s32.totalorder %s149, 0
      %s152 = sadd.s32 %s151, 1
      %s153 = scalar_select %p150, %s151, %s152
      %p156 = pneg %p150
      %p157 = scmp.eq.s32.totalorder %s21, 1
      %p158 = por %p156, %p157
      %p159 = scmp.ne.s32.totalorder %s151, %s154
      %p160 = scmp.eq.s32.totalorder %s21, 0
      %p161 = por %p159, %p160
      %p162 = scmp.ne.s32.totalorder %s151, %s154
      %p163 = scmp.eq.s32.totalorder %s26, 1
      %p164 = por %p162, %p163
      %p165 = scmp.ne.s32.totalorder %s154, %s155
      %p166 = scmp.eq.s32.totalorder %s26, 0
      %p167 = por %p165, %p166
      %p168 = scmp.ne.s32.totalorder %s154, %s155
      %p169 = scmp.eq.s32.totalorder %s27, 1
      %p170 = por %p168, %p169
      %p172 = scmp.ne.s32.totalorder %s155, %s171
      %p173 = scmp.eq.s32.totalorder %s27, 0
      %p174 = por %p172, %p173
      %p175 = scmp.le.s32.totalorder 1, %s21
      %p176 = scmp.lt.s32.totalorder %s21, 3
      %p177 = pnand %p175, %p176
      %p178 = pneg %p177
      // Predicated region
      $region9: #{tpu_custom_call.1} parent=5 // pred_check
        _
      $region10: #{tpu_custom_call.1} parent=5 // pred_check_branch
        %180 = sbr.rel (%p177) target = $region12
      $region11: #{tpu_custom_call.1} parent=5 // pred_region
        %s181 = ssub.s32 %s21, 1
        // Predicated region
        $region13: #{tpu_custom_call.1} parent=11 // pred_check
          %p182 = pneg %p85
        $region14: #{tpu_custom_call.1} parent=11 // pred_check_branch
          %184 = sbr.rel (%p182) target = $region16
        $region15: #{tpu_custom_call.1} parent=11 // pred_region
          %s186 = ssub.s32 1024, 1024
          %187 = vsyncadd [#allocation8], %s186
          %s188 = smul.addr %s30, 128
          %s189 = scalar_lea.hbm %s1, %s188
          %s190 = sshll.u32 [#allocation7], 4
          %s191 = int_to_ptr.vmem [resolvable:$true] %s190
          %196 = dma.hbm_to_vmem [thread:$0]  %s189, 1024, %s191, [#allocation8], 128, 128, 8
        $region16: #{tpu_custom_call.1} parent=11 // pred_fallthru
          _
        // Predicated region
        $region17: #{tpu_custom_call.1} parent=11 // pred_check
          %p197 = pneg %p111
        $region18: #{tpu_custom_call.1} parent=11 // pred_check_branch
          %199 = sbr.rel (%p197) target = $region20
        $region19: #{tpu_custom_call.1} parent=11 // pred_region
          %p200 = scmp.lt.s32.totalorder %s30, 0
          %s201 = scalar_select %p200, %s30, 0
          %s202 = scalar_lea.vmem %s2, %s201
        $region20: #{tpu_custom_call.1} parent=11 // pred_fallthru
          _
      $region12: #{tpu_custom_call.1} parent=5 // pred_fallthru
        _
      %p203 = scmp.lt.s32.totalorder %s21, 2
      // Predicated region
      $region21: #{tpu_custom_call.1} parent=5 // pred_check
        %p204 = pneg %p203
      $region22: #{tpu_custom_call.1} parent=5 // pred_check_branch
        %206 = sbr.rel (%p204) target = $region24
      $region23: #{tpu_custom_call.1} parent=5 // pred_region
        // Predicated region
        $region25: #{tpu_custom_call.1} parent=23 // pred_check
          %p207 = pneg %p53
        $region26: #{tpu_custom_call.1} parent=23 // pred_check_branch
          %209 = sbr.rel (%p207) target = $region28
        $region27: #{tpu_custom_call.1} parent=23 // pred_region
          %s210 = sand.u32 %s43, 1
          %s211 = scalar_lea.sflag [#allocation5], %s210
          %s212 = sand.u32 %s43, 1
          %s213 = smul.addr %s212, 32
          %s214 = scalar_lea.vmem [#allocation4], %s213
          %s215 = smul.u32 4, %s29
          %s217 = ssub.s32 512, 512
          %218 = vsyncadd %s211, %s217
          %s219 = smul.addr %s215, 128
          %s220 = scalar_lea.hbm %s0, %s219
          %s221 = sshll.u32 %s214, 4
          %s222 = int_to_ptr.vmem [resolvable:$true] %s221
          %227 = dma.hbm_to_vmem [thread:$0]  %s220, 512, %s222, %s211, 128, 128, 8
        $region28: #{tpu_custom_call.1} parent=23 // pred_fallthru
          _
      $region24: #{tpu_custom_call.1} parent=5 // pred_fallthru
        _
      %p228 = scmp.le.s32.totalorder 1, %s21
      %p229 = scmp.lt.s32.totalorder %s21, 3
      %p230 = pnand %p228, %p229
      %p231 = pneg %p230
      // Predicated region
      $region29: #{tpu_custom_call.1} parent=5 // pred_check
        _
      $region30: #{tpu_custom_call.1} parent=5 // pred_check_branch
        %233 = sbr.rel (%p230) target = $region32
      $region31: #{tpu_custom_call.1} parent=5 // pred_region
        %s234 = ssub.s32 %s21, 1
        %s235 = sand.u32 %s46, 1
        %s236 = scalar_lea.sflag [#allocation5], %s235
        %s237 = sand.u32 %s46, 1
        %s238 = smul.addr %s237, 32
        %s239 = scalar_lea.vmem [#allocation4], %s238
        // Predicated region
        $region33: #{tpu_custom_call.1} parent=31 // pred_check
          %p240 = pneg %p59
        $region34: #{tpu_custom_call.1} parent=31 // pred_check_branch
          %242 = sbr.rel (%p240) target = $region36
        $region35: #{tpu_custom_call.1} parent=31 // pred_region
          %243 = dma.done %s236, 512
        $region36: #{tpu_custom_call.1} parent=31 // pred_fallthru
          _
        // Predicated region
        $region37: #{tpu_custom_call.1} parent=31 // pred_check
          %p244 = pneg %p85
        $region38: #{tpu_custom_call.1} parent=31 // pred_check_branch
          %246 = sbr.rel (%p244) target = $region40
        $region39: #{tpu_custom_call.1} parent=31 // pred_region
          %247 = dma.done [#allocation8], 1024
        $region40: #{tpu_custom_call.1} parent=31 // pred_fallthru
          _
        %s248 = sand.u32 %s46, 1
        %s249 = scalar_lea.sflag [#allocation5], %s248
        %s250 = sand.u32 %s46, 1
        %s251 = smul.addr %s250, 32
        %s252 = scalar_lea.vmem [#allocation4], %s251
        %p253 = pneg %p59
        %p254 = pneg %p56
        %p255 = pneg %p85
        %p256 = pneg %p82
        %p257 = scmp.lt.s32.totalorder %s30, 0
        %s258 = scalar_select %p257, %s30, 0
        %s259 = scalar_lea.vmem %s2, %s258
        %p260 = pneg %p111
        %p261 = pneg %p108
        %p262 = pneg %p139
        %p263 = pneg %p136
        %s264 = sand.u32 %s126, 1
        %s265 = scalar_lea.sflag [#allocation6], %s264
        %s266 = sand.u32 %s126, 1
        %s267 = smul.addr %s266, 32
        %s268 = scalar_lea.vmem [#allocation9], %s267
        %p269 = pneg %p167
        %p270 = pneg %p164
        %s271 = sand.u32 %s154, 1
        %s272 = scalar_lea.sflag [#allocation11], %s271
        %s273 = sand.u32 %s154, 1
        %s274 = smul.addr %s273, 32
        %s275 = scalar_lea.vmem [#allocation10], %s274
        %s276 = smul.u32 4, %s31
        %p277 = scmp.lt.s32.totalorder %s30, 0
        %s278 = scalar_select %p277, %s30, 0
        %s279 = scalar_lea.vmem %s2, %s278
        %s280 = smul.u32 4, %s31
        %s281 = smul.u32 4, %s31
        %p282 = scmp.eq.s32.totalorder %s31, 0
        // Predicated region
        $region41: #{tpu_custom_call.1} parent=31 // pred_check
          %p283 = pneg %p282
        $region42: #{tpu_custom_call.1} parent=31 // pred_check_branch
          %285 = sbr.rel (%p283) target = $region44
        $region43: #{tpu_custom_call.1} parent=31 // pred_region
          %286 = vst [vmem:[#allocation2] sm:$0xff] 0.0
        $region44: #{tpu_custom_call.1} parent=31 // pred_fallthru
          _
        %v287 = vld [vmem:[%s239] sm:$0xff]
        %v288 = vld [vmem:[%s239 + $0x8] sm:$0xff]
        %v289 = vld [vmem:[%s239 + $0x10] sm:$0xff]
        %v290 = vld [vmem:[%s239 + $0x18] sm:$0xff]
        %v291 = vld [vmem:[#allocation7] sm:$0xff]
        %v292 = vld [vmem:[#allocation7 + $0x8] sm:$0xff]
        %v293 = vld [vmem:[#allocation7 + $0x10] sm:$0xff]
        %v294 = vld [vmem:[#allocation7 + $0x18] sm:$0xff]
        %v295 = vld [vmem:[#allocation7 + $0x20] sm:$0xff]
        %v296 = vld [vmem:[#allocation7 + $0x28] sm:$0xff]
        %v297 = vld [vmem:[#allocation7 + $0x30] sm:$0xff]
        %v298 = vld [vmem:[#allocation7 + $0x38] sm:$0xff]
        %v299 = vld [vmem:[%s279] sm:$0x1]
        %v301 = vlaneseq
        %v302 = vshrl.u32 %v301, 7
        %v303 = vsub.s32 0, %v302
        %v304 = vrot.slane %v299, %v303
        %vm306 = vcmask 523264
        %v308 = vsel %vm306, %v287, 0
        %v311 = vsel %vm306, %v288, 0
        %v314 = vsel %vm306, %v289, 0
        %v317 = vsel %vm306, %v290, 0
        %319 = vmatprep.subr.mxu0 0.0
        %320 = vmatpush1.msra.mxu0 %v291
        %321 = vmatprep.subr.mxu0 0.0
        %322 = vmatpush1.msra.mxu0 %v292
        %323 = vmatprep.subr.mxu0 0.0
        %324 = vmatpush1.msra.mxu0 %v293
        %325 = vmatprep.subr.mxu0 0.0
        %326 = vmatpush1.msra.mxu0 %v294
        %327 = vmatprep.subr.mxu0 0.0
        %328 = vmatpush1.msra.mxu0 %v295
        %329 = vmatprep.subr.mxu0 0.0
        %330 = vmatpush1.msra.mxu0 %v296
        %331 = vmatprep.subr.mxu0 0.0
        %332 = vmatpush1.msra.mxu0 %v297
        %333 = vmatprep.subr.mxu0 0.0
        %334 = vmatpush1.msra.mxu0 %v298
        %335 = vmatprep.subr.mxu0 0.0
        %336 = vmatpush1.msra.mxu0 0.0
        %337 = vmatprep.subr.mxu0 0.0
        %338 = vmatpush1.msra.mxu0 0.0
        %339 = vmatprep.subr.mxu0 0.0
        %340 = vmatpush1.msra.mxu0 0.0
        %341 = vmatprep.subr.mxu0 0.0
        %342 = vmatpush1.msra.mxu0 0.0
        %343 = vmatprep.subr.mxu0 0.0
        %344 = vmatpush1.msra.mxu0 0.0
        %345 = vmatprep.subr.mxu0 0.0
        %346 = vmatpush1.msra.mxu0 0.0
        %347 = vmatprep.subr.mxu0 0.0
        %348 = vmatpush1.msra.mxu0 0.0
        %349 = vmatprep.subr.mxu0 0.0
        %350 = vmatpush1.msra.mxu0 0.0
        %351 = vmatprep.subr.mxu0 0.0
        %352 = vmatpush1.msra.mxu0 0.0
        %353 = vmatprep.subr.mxu0 0.0
        %354 = vmatpush1.msra.mxu0 0.0
        %355 = vmatprep.subr.mxu0 0.0
        %356 = vmatpush1.msra.mxu0 0.0
        %357 = vmatprep.subr.mxu0 0.0
        %358 = vmatpush1.msra.mxu0 0.0
        %359 = vmatprep.subr.mxu0 0.0
        %360 = vmatpush1.msra.mxu0 0.0
        %361 = vmatprep.subr.mxu0 0.0
        %362 = vmatpush1.msra.mxu0 0.0
        %363 = vmatprep.subr.mxu0 0.0
        %364 = vmatpush1.msra.mxu0 0.0
        %365 = vmatprep.subr.mxu0 0.0
        %366 = vmatpush1.msra.mxu0 0.0
        %367 = vmatprep.subr.mxu0 0.0
        %368 = vmatpush1.msra.mxu0 0.0
        %369 = vmatprep.subr.mxu0 0.0
        %370 = vmatpush1.msra.mxu0 0.0
        %371 = vmatprep.subr.mxu0 0.0
        %372 = vmatpush1.msra.mxu0 0.0
        %373 = vmatprep.subr.mxu0 0.0
        %374 = vmatpush1.msra.mxu0 0.0
        %375 = vmatprep.subr.mxu0 0.0
        %376 = vmatpush1.msra.mxu0 0.0
        %377 = vmatprep.subr.mxu0 0.0
        %378 = vmatpush1.msra.mxu0 0.0
        %379 = vmatprep.subr.mxu0 0.0
        %380 = vmatpush1.msra.mxu0 0.0
        %381 = vmatprep.subr.mxu0 0.0
        %382 = vmatpush1.msra.mxu0 0.0
        %383 = vmatprep.mubr.f32.mxu0 0.0
        %384 = vmatmul.mubr.f32.gmra.mrb[0].mxu0 %v308
        %v385 = vpop.f32.mrb[0].mxu0
        %v386 = vadd.f32 %v304, %v385
        %v387 = vpop.f32.mrb[0].mxu0
        %388 = vmatprep.mubr.f32.mxu0 0.0
        %389 = vmatmul.mubr.f32.gmra.mrb[0].mxu0 %v311
        %v390 = vpop.f32.mrb[0].mxu0
        %v391 = vadd.f32 %v304, %v390
        %v392 = vpop.f32.mrb[0].mxu0
        %393 = vmatprep.mubr.f32.mxu0 0.0
        %394 = vmatmul.mubr.f32.gmra.mrb[0].mxu0 %v314
        %v395 = vpop.f32.mrb[0].mxu0
        %v396 = vadd.f32 %v304, %v395
        %v397 = vpop.f32.mrb[0].mxu0
        %398 = vmatprep.mubr.f32.mxu0 0.0
        %399 = vmatmul.mubr.f32.gmra.mrb[0].mxu0 %v317
        %v400 = vpop.f32.mrb[0].mxu0
        %v401 = vadd.f32 %v304, %v400
        %v402 = vpop.f32.mrb[0].mxu0
        %403 = vdwg.mxu0
        %404 = vst [vmem:[#allocation3] sm:$0xff] %v386
        %405 = vst [vmem:[#allocation3 + $0x8] sm:$0xff] %v391
        %406 = vst [vmem:[#allocation3 + $0x10] sm:$0xff] %v396
        %407 = vst [vmem:[#allocation3 + $0x18] sm:$0xff] %v401
        %v408 = vld [vmem:[#allocation2] sm:$0xff]
        %v409 = vld [vmem:[#allocation3] sm:$0xff]
        %v410 = vmul.f32 %v408, 0.9
        %v411 = vadd.f32 %v410, %v409
        %vm412 = vcmp.ge.f32.partialorder %v411, 1.0
        %v413 = vsel %vm412, 1, 0
        %v414 = vcvt.s32.f32 %v413
        %415 = vst [vmem:[%s268] sm:$0xff] %v414
        %v416 = vsub.f32 %v411, 1.0
        %v417 = vsel %vm412, %v416, %v411
        %418 = vst [vmem:[%s275] sm:$0xff] %v417
        %s419 = scalar_lea.vmem [#allocation3], 8
        %v420 = vld [vmem:[%s419] sm:$0xff]
        %v421 = vmul.f32 %v417, 0.9
        %v422 = vadd.f32 %v421, %v420
        %vm423 = vcmp.ge.f32.partialorder %v422, 1.0
        %v424 = vsel %vm423, 1, 0
        %v425 = vcvt.s32.f32 %v424
        %s426 = scalar_lea.vmem %s268, 8 [#allocation9]
        %427 = vst [vmem:[%s426] sm:$0xff] %v425
        %v428 = vsub.f32 %v422, 1.0
        %v429 = vsel %vm423, %v428, %v422
        %s430 = scalar_lea.vmem %s275, 8 [#allocation10]
        %431 = vst [vmem:[%s430] sm:$0xff] %v429
        %s432 = scalar_lea.vmem [#allocation3], 16
        %v433 = vld [vmem:[%s432] sm:$0xff]
        %v434 = vmul.f32 %v429, 0.9
        %v435 = vadd.f32 %v434, %v433
        %vm436 = vcmp.ge.f32.partialorder %v435, 1.0
        %v437 = vsel %vm436, 1, 0
        %v438 = vcvt.s32.f32 %v437
        %s439 = scalar_lea.vmem %s268, 16 [#allocation9]
        %440 = vst [vmem:[%s439] sm:$0xff] %v438
        %v441 = vsub.f32 %v435, 1.0
        %v442 = vsel %vm436, %v441, %v435
        %s443 = scalar_lea.vmem %s275, 16 [#allocation10]
        %444 = vst [vmem:[%s443] sm:$0xff] %v442
        %s445 = scalar_lea.vmem [#allocation3], 24
        %v446 = vld [vmem:[%s445] sm:$0xff]
        %v447 = vmul.f32 %v442, 0.9
        %v448 = vadd.f32 %v447, %v446
        %vm449 = vcmp.ge.f32.partialorder %v448, 1.0
        %v450 = vsel %vm449, 1, 0
        %v451 = vcvt.s32.f32 %v450
        %s452 = scalar_lea.vmem %s268, 24 [#allocation9]
        %453 = vst [vmem:[%s452] sm:$0xff] %v451
        %v454 = vsub.f32 %v448, 1.0
        %v455 = vsel %vm449, %v454, %v448
        %s456 = scalar_lea.vmem %s275, 24 [#allocation10]
        %457 = vst [vmem:[%s456] sm:$0xff] %v455
        %458 = vst [vmem:[#allocation2] sm:$0xff] %v455
        %s459 = sand.u32 %s126, 1
        %s460 = scalar_lea.sflag [#allocation6], %s459
        %s461 = sand.u32 %s126, 1
        %s462 = smul.addr %s461, 32
        %s463 = scalar_lea.vmem [#allocation9], %s462
        %s464 = sand.u32 %s154, 1
        %s465 = scalar_lea.sflag [#allocation11], %s464
        %s466 = sand.u32 %s154, 1
        %s467 = smul.addr %s466, 32
        %s468 = scalar_lea.vmem [#allocation10], %s467
        // Predicated region
        $region45: #{tpu_custom_call.1} parent=31 // pred_check
          %p469 = pneg %p136
        $region46: #{tpu_custom_call.1} parent=31 // pred_check_branch
          %471 = sbr.rel (%p469) target = $region48
        $region47: #{tpu_custom_call.1} parent=31 // pred_region
          %s472 = smul.u32 4, %s31
          %s474 = ssub.s32 512, 512
          %475 = vsyncadd %s460, %s474
          %s476 = sadd.s32 %s30, %s472
          %s477 = smul.addr %s476, 128
          %s478 = scalar_lea.hbm %s3, %s477
          %s479 = sshll.u32 %s463, 4
          %s480 = int_to_ptr.vmem [resolvable:$true] %s479
          %485 = dma.vmem_to_hbm [thread:$0]  %s480, 512, %s478, %s460, 128, 128, 8
        $region48: #{tpu_custom_call.1} parent=31 // pred_fallthru
          _
        // Predicated region
        $region49: #{tpu_custom_call.1} parent=31 // pred_check
          %p486 = pneg %p164
        $region50: #{tpu_custom_call.1} parent=31 // pred_check_branch
          %488 = sbr.rel (%p486) target = $region52
        $region51: #{tpu_custom_call.1} parent=31 // pred_region
          %s489 = smul.u32 4, %s31
          %s491 = ssub.s32 512, 512
          %492 = vsyncadd %s465, %s491
          %s493 = sadd.s32 %s30, %s489
          %s494 = smul.addr %s493, 128
          %s495 = scalar_lea.hbm %s4, %s494
          %s496 = sshll.u32 %s468, 4
          %s497 = int_to_ptr.vmem [resolvable:$true] %s496
          %502 = dma.vmem_to_hbm [thread:$0]  %s497, 512, %s495, %s465, 128, 128, 8
        $region52: #{tpu_custom_call.1} parent=31 // pred_fallthru
          _
      $region32: #{tpu_custom_call.1} parent=5 // pred_fallthru
        _
      %p503 = scmp.le.s32.totalorder 2, %s21
      // Predicated region
      $region53: #{tpu_custom_call.1} parent=5 // pred_check
        %p504 = pneg %p503
      $region54: #{tpu_custom_call.1} parent=5 // pred_check_branch
        %506 = sbr.rel (%p504) target = $region56
      $region55: #{tpu_custom_call.1} parent=5 // pred_region
        %s507 = ssub.s32 %s21, 2
        // Predicated region
        $region57: #{tpu_custom_call.1} parent=55 // pred_check
          %p508 = pneg %p142
        $region58: #{tpu_custom_call.1} parent=55 // pred_check_branch
          %510 = sbr.rel (%p508) target = $region60
        $region59: #{tpu_custom_call.1} parent=55 // pred_region
          %s511 = sand.u32 %s127, 1
          %s512 = scalar_lea.sflag [#allocation6], %s511
          %s513 = sand.u32 %s127, 1
          %s514 = smul.addr %s513, 32
          %s515 = scalar_lea.vmem [#allocation9], %s514
          %516 = dma.done %s512, 512
        $region60: #{tpu_custom_call.1} parent=55 // pred_fallthru
          _
        // Predicated region
        $region61: #{tpu_custom_call.1} parent=55 // pred_check
          %p517 = pneg %p170
        $region62: #{tpu_custom_call.1} parent=55 // pred_check_branch
          %519 = sbr.rel (%p517) target = $region64
        $region63: #{tpu_custom_call.1} parent=55 // pred_region
          %s520 = sand.u32 %s155, 1
          %s521 = scalar_lea.sflag [#allocation11], %s520
          %s522 = sand.u32 %s155, 1
          %s523 = smul.addr %s522, 32
          %s524 = scalar_lea.vmem [#allocation10], %s523
          %525 = dma.done %s521, 512
        $region64: #{tpu_custom_call.1} parent=55 // pred_fallthru
          _
      $region56: #{tpu_custom_call.1} parent=5 // pred_fallthru
        _
    $region6: #{tpu_custom_call.1} parent=1 // loop_footer
      %s25 = sadd.s32 1, %s21
    $region7: #{tpu_custom_call.1} parent=1 // loop_footer_branch
      %20 = sbr.rel target = $region3
    $region8: #{tpu_custom_call.1} parent=1 // loop_exit
      _
    %526 = vsyncpa [#allocation5], 1
    %s527 = scalar_lea.sflag [#allocation5], 1
    %528 = vsyncpa %s527, 1
    %529 = vsyncpa [#allocation8], 1
    %530 = vsyncpa [#allocation6], 1
    %s531 = scalar_lea.sflag [#allocation6], 1
    %532 = vsyncpa %s531, 1
    %533 = vsyncpa [#allocation11], 1
    %s534 = scalar_lea.sflag [#allocation11], 1
    %535 = vsyncpa %s534, 1

</llo_original>
